<compile_context>
chip_gen: v5e
topology: v5e:2x2
jax: 0.10.0
libtpu: 0.0.40
codegen_flags: <defaults>
</compile_context>

<pallas_src>
import jax
import jax.numpy as jnp
from jax.experimental import pallas as pl
from jax.experimental.pallas import tpu as pltpu


_MAX_BLOCK_B = 512      # keeps the working set inside v5e's 16 MiB default scoped VMEM
_NUM_CLASSES = 10       # logical width of head Linear #2
_HEAD_PAD = 128         # lane-dense padded width of the kernel output


def _round_up(n, m):
    return ((n + m - 1) // m) * m


# ---------------------------------------------------------------------------
# Fused Pallas kernel: conv1 -> conv2 -> (fc_z folded + head[0]) -> head[2]
# ---------------------------------------------------------------------------

def _fused_forward_kernel(x_ref, c1m_ref, c1b_ref, c2m_ref, c2b_ref,
                          f1w_ref, f1b_ref, f2w_ref, f2b_ref, o_ref):
    # conv1 as dense bf16 matmul (f32 acc) + bias + ReLU       -> [bb, 512] f32
    h = jnp.dot(x_ref[...], c1m_ref[...], preferred_element_type=jnp.float32)
    h = jnp.maximum(h + c1b_ref[...], 0.0)
    # conv2 as dense bf16 matmul + bias + ReLU                  -> [bb, 256] f32
    # (this IS flatten(encoder(x)) in PyTorch NCHW .view(B,-1) order)
    h = jnp.dot(h.astype(jnp.bfloat16), c2m_ref[...],
                preferred_element_type=jnp.float32)
    h = jnp.maximum(h + c2b_ref[...], 0.0)
    # fc_z folded into head Linear #1, + ReLU                   -> [bb, 32] f32
    h = jnp.dot(h.astype(jnp.bfloat16), f1w_ref[...],
                preferred_element_type=jnp.float32)
    h = jnp.maximum(h + f1b_ref[...], 0.0)
    # head Linear #2 (zero-padded to 128 lanes)                 -> [bb, 128] f32
    y = jnp.dot(h.astype(jnp.bfloat16), f2w_ref[...],
                preferred_element_type=jnp.float32)
    o_ref[...] = (y + f2b_ref[...]).astype(o_ref.dtype)


def _pick_block_b(B):
    if B <= 8:
        return B                                   # single block == full batch dim
    # Aim for >=2 grid steps so v7x's two TensorCores are both used.
    return min(_MAX_BLOCK_B, _round_up(pl.cdiv(B, 2), 8))


def _fused_forward(fused, x_flat):
    B, K1 = x_flat.shape
    bb = _pick_block_b(B)
    grid = (pl.cdiv(B, bb),)

    def batch_spec(n):
        return pl.BlockSpec((bb, n), lambda i: (i, 0))

    def full_spec(arr):
        shape = arr.shape
        # Constant index_map across the grid -> single-buffered is enough.
        return pl.BlockSpec(shape, lambda i: (0,) * len(shape),
                            pipeline_mode=pl.Buffered(1))

    return pl.pallas_call(
        _fused_forward_kernel,
        out_shape=jax.ShapeDtypeStruct((B, _HEAD_PAD), jnp.float32),
        grid=grid,
        in_specs=[
            batch_spec(K1),
            full_spec(fused["c1m"]), full_spec(fused["c1b"]),
            full_spec(fused["c2m"]), full_spec(fused["c2b"]),
            full_spec(fused["f1w"]), full_spec(fused["f1b"]),
            full_spec(fused["f2w"]), full_spec(fused["f2b"]),
        ],
        out_specs=batch_spec(_HEAD_PAD),
        compiler_params=pltpu.CompilerParams(
            dimension_semantics=("parallel",)),
    )(x_flat, fused["c1m"], fused["c1b"], fused["c2m"], fused["c2b"],
      fused["f1w"], fused["f1b"], fused["f2w"], fused["f2b"])


@jax.jit
def sequential_vae_forward(fused, x):
    """SequentialVAE.forward(x, training=False): head(fc_z(flatten(encoder(x))))."""
    B = x.shape[0]
    x_flat = x.reshape(B, -1).astype(jnp.bfloat16)   # NCHW flatten == c1m row order
    y = _fused_forward(fused, x_flat)
    return y[:, :_NUM_CLASSES]                       # drop lane padding of head #2


# ---------------------------------------------------------------------------
# One-time (init-time) lowering of PyTorch-style parameters
# ---------------------------------------------------------------------------

def _conv_as_matrix(w, h_in, w_in, stride, pad):
    """Dense M with rows ci*(H*W)+ih*W+iw and cols co*(Ho*Wo)+oh*Wo+ow, so that
    flatten_nchw(conv2d(x, w, stride, pad)) == flatten_nchw(x) @ M  (no bias).
    Entries are exactly the conv weights or 0 (each entry has <=1 contributing
    tap, and the selectors are exact 0/1)."""
    c_out, c_in, k, _ = w.shape
    h_out = (h_in + 2 * pad - k) // stride + 1
    w_out = (w_in + 2 * pad - k) // stride + 1
    kk = jnp.arange(k)
    # sel_h[kh, oh, ih] = 1 iff ih == stride*oh + kh - pad (no match <=> zero pad)
    sel_h = (jnp.arange(h_in)[None, None, :]
             == stride * jnp.arange(h_out)[None, :, None]
             + kk[:, None, None] - pad).astype(w.dtype)
    sel_w = (jnp.arange(w_in)[None, None, :]
             == stride * jnp.arange(w_out)[None, :, None]
             + kk[:, None, None] - pad).astype(w.dtype)
    # m6[ci, ih, iw, co, oh, ow] = sum_{kh,kw} w[co,ci,kh,kw]*sel_h[kh,oh,ih]*sel_w[kw,ow,iw]
    m6 = jnp.einsum("oikl,kyh,lxw->ihwoyx", w, sel_h, sel_w,
                    precision=jax.lax.Precision.HIGHEST)
    return m6.reshape(c_in * h_in * w_in, c_out * h_out * w_out), h_out, w_out


def build_fused_params(params, h_in=16, w_in=16):
    """Lower the PyTorch-style parameters to the fused kernel's weights:
    conv lowering matrices (bf16) + (fc_z folded into head Linear #1, bf16)
    + lane-padded head Linear #2.  Biases stay f32.  Done once at init."""
    hi = jax.lax.Precision.HIGHEST
    bf = jnp.bfloat16
    c1m, ho1, wo1 = _conv_as_matrix(params["c1_w"], h_in, w_in, 2, 1)
    c1b = jnp.repeat(params["c1_b"], ho1 * wo1)[None, :]
    c2m, ho2, wo2 = _conv_as_matrix(params["c2_w"], ho1, wo1, 2, 1)
    c2b = jnp.repeat(params["c2_b"], ho2 * wo2)[None, :]
    # fc_z -> head[0] fold: no nonlinearity in between, exact algebra (in f32).
    f1w = jnp.dot(params["fcz_w"], params["h1_w"], precision=hi)
    f1b = (jnp.dot(params["fcz_b"], params["h1_w"], precision=hi)
           + params["h1_b"])[None, :]
    # Lane-dense padding of head Linear #2: 10 -> 128 output lanes (zeros).
    h2_w, h2_b = params["h2_w"], params["h2_b"]
    f2w = jnp.zeros((h2_w.shape[0], _HEAD_PAD), jnp.float32)
    f2w = f2w.at[:, :h2_w.shape[1]].set(h2_w)
    f2b = jnp.zeros((1, _HEAD_PAD), jnp.float32)
    f2b = f2b.at[0, :h2_b.shape[0]].set(h2_b)
    return dict(c1m=c1m.astype(bf), c1b=c1b,
                c2m=c2m.astype(bf), c2b=c2b,
                f1w=f1w.astype(bf), f1b=f1b,
                f2w=f2w.astype(bf), f2b=f2b)


def _uniform_init(key, shape, fan_in):
    bound = 1.0 / jnp.sqrt(jnp.float32(fan_in))
    return jax.random.uniform(key, shape, jnp.float32, -bound, bound)


def init_params(key):
    ks = jax.random.split(key, 10)
    p = {}
    p["c1_w"] = _uniform_init(ks[0], (8, 4, 3, 3), 4 * 9)     # conv 4->8
    p["c1_b"] = _uniform_init(ks[1], (8,), 4 * 9)
    p["c2_w"] = _uniform_init(ks[2], (16, 8, 3, 3), 8 * 9)    # conv 8->16
    p["c2_b"] = _uniform_init(ks[3], (16,), 8 * 9)
    p["fcz_w"] = _uniform_init(ks[4], (256, 100), 256)        # fc_z 256->100
    p["fcz_b"] = _uniform_init(ks[5], (100,), 256)
    p["h1_w"] = _uniform_init(ks[6], (100, 32), 100)          # head 100->32
    p["h1_b"] = _uniform_init(ks[7], (32,), 100)
    p["h2_w"] = _uniform_init(ks[8], (32, 10), 32)            # head 32->10
    p["h2_b"] = _uniform_init(ks[9], (10,), 32)
    return p


# ---------------------------------------------------------------------------
# Pure-JAX references for correctness checks
# ---------------------------------------------------------------------------

def _im2col_nchw(x, k, stride, pad):
    b, c, h, w = x.shape
    xp = jnp.pad(x, ((0, 0), (0, 0), (pad, pad), (pad, pad)))
    ho = (h + 2 * pad - k) // stride + 1
    wo = (w + 2 * pad - k) // stride + 1
    cols = []
    for kh in range(k):
        for kw in range(k):
            cols.append(xp[:, :, kh:kh + stride * ho:stride,
                           kw:kw + stride * wo:stride])
    cols = jnp.stack(cols, 0).reshape(k, k, b, c, ho, wo)
    cols = cols.transpose(2, 4, 5, 3, 0, 1)                   # [b,ho,wo,c,kh,kw]
    return cols.reshape(b * ho * wo, c * k * k), ho, wo


def _reference_encoder(params, x):
    def conv_relu(x, w, b):
        c_out, c_in, k, _ = w.shape
        patches, ho, wo = _im2col_nchw(x, k, 2, 1)
        y = jnp.maximum(patches @ w.reshape(c_out, c_in * k * k).T + b, 0.0)
        return y.reshape(x.shape[0], ho, wo, c_out).transpose(0, 3, 1, 2)

    h = conv_relu(x, params["c1_w"], params["c1_b"])
    h = conv_relu(h, params["c2_w"], params["c2_b"])
    return h.reshape(h.shape[0], -1)            # PyTorch .view(B, -1) on NCHW


def reference_forward(params, x):
    """Original (unfolded, full-f32) module semantics."""
    x_enc = _reference_encoder(params, x)
    q = x_enc @ params["fcz_w"] + params["fcz_b"]
    h = jnp.maximum(q @ params["h1_w"] + params["h1_b"], 0.0)
    return h @ params["h2_w"] + params["h2_b"]


def reference_forward_fused_bf16(fused, x):
    """Mirror of the kernel's mixed-precision math in pure JAX (tight check)."""
    h = x.reshape(x.shape[0], -1).astype(jnp.bfloat16)
    h = jnp.dot(h, fused["c1m"], preferred_element_type=jnp.float32)
    h = jnp.maximum(h + fused["c1b"], 0.0)
    h = jnp.dot(h.astype(jnp.bfloat16), fused["c2m"],
                preferred_element_type=jnp.float32)
    h = jnp.maximum(h + fused["c2b"], 0.0)
    h = jnp.dot(h.astype(jnp.bfloat16), fused["f1w"],
                preferred_element_type=jnp.float32)
    h = jnp.maximum(h + fused["f1b"], 0.0)
    y = jnp.dot(h.astype(jnp.bfloat16), fused["f2w"],
                preferred_element_type=jnp.float32)
    return (y + fused["f2b"])[:, :_NUM_CLASSES]


if __name__ == "__main__":
    key = jax.random.PRNGKey(0)
    k_x, k_p, k_x2 = jax.random.split(key, 3)
    params = init_params(k_p)
    fused = build_fused_params(params)

    # Main small-shape case: B=2 (single grid step).
    x = jax.random.normal(k_x, (2, 4, 16, 16), jnp.float32)   # NCHW input
    y = sequential_vae_forward(fused, x)
    y = jax.block_until_ready(y)
    assert y.shape == (2, _NUM_CLASSES), y.shape

    # Tight check: same bf16/f32 mixed-precision math in pure JAX.
    y_tight = reference_forward_fused_bf16(fused, x)
    assert jnp.allclose(y, y_tight, atol=1e-2, rtol=1e-2), "mismatch vs bf16 fused reference"

    # Semantic check vs the original unfolded all-f32 forward (bf16 rounding).
    y_orig = reference_forward(params, x)
    assert jnp.allclose(y, y_orig, atol=5e-2, rtol=5e-2), "mismatch vs original forward"

    # Secondary case exercising a multi-step (parallel) batch grid: B=16 -> bb=8, grid=(2,).
    x2 = jax.random.normal(k_x2, (16, 4, 16, 16), jnp.float32)
    y2 = jax.block_until_ready(sequential_vae_forward(fused, x2))
    y2_orig = reference_forward(params, x2)
    assert y2.shape == (16, _NUM_CLASSES), y2.shape
    assert jnp.allclose(y2, y2_orig, atol=5e-2, rtol=5e-2), "mismatch on multi-block batch"

    print("KERNEL_OK")
</pallas_src>

<mosaic_0001>
module attributes {stable_mosaic.version = 11 : i64} {
  func.func @_fused_forward_kernel(%arg0: i32, %arg1: memref<2x1024xbf16, #tpu.memory_space<vmem>>, %arg2: memref<1024x512xbf16, #tpu.memory_space<vmem>>, %arg3: memref<1x512xf32, #tpu.memory_space<vmem>>, %arg4: memref<512x256xbf16, #tpu.memory_space<vmem>>, %arg5: memref<1x256xf32, #tpu.memory_space<vmem>>, %arg6: memref<256x32xbf16, #tpu.memory_space<vmem>>, %arg7: memref<1x32xf32, #tpu.memory_space<vmem>>, %arg8: memref<32x128xbf16, #tpu.memory_space<vmem>>, %arg9: memref<1x128xf32, #tpu.memory_space<vmem>>, %arg10: memref<2x128xf32, #tpu.memory_space<vmem>>) attributes {dimension_semantics = [#tpu.dimension_semantics<parallel>], iteration_bounds = array<i64: 1>, scalar_prefetch = 0 : i64, scratch_operands = 0 : i64, tpu.core_type = #tpu.core_type<tc>, window_params = [{transform_indices = @transform_0, window_bounds = array<i64: 2, 1024>}, {pipeline_mode = #tpu.pipeline_mode<synchronous>, transform_indices = @transform_1, window_bounds = array<i64: 1024, 512>}, {pipeline_mode = #tpu.pipeline_mode<synchronous>, transform_indices = @transform_2, window_bounds = array<i64: 1, 512>}, {pipeline_mode = #tpu.pipeline_mode<synchronous>, transform_indices = @transform_3, window_bounds = array<i64: 512, 256>}, {pipeline_mode = #tpu.pipeline_mode<synchronous>, transform_indices = @transform_4, window_bounds = array<i64: 1, 256>}, {pipeline_mode = #tpu.pipeline_mode<synchronous>, transform_indices = @transform_5, window_bounds = array<i64: 256, 32>}, {pipeline_mode = #tpu.pipeline_mode<synchronous>, transform_indices = @transform_6, window_bounds = array<i64: 1, 32>}, {pipeline_mode = #tpu.pipeline_mode<synchronous>, transform_indices = @transform_7, window_bounds = array<i64: 32, 128>}, {pipeline_mode = #tpu.pipeline_mode<synchronous>, transform_indices = @transform_8, window_bounds = array<i64: 1, 128>}, {transform_indices = @transform_9, window_bounds = array<i64: 2, 128>}]} {
    %c0 = arith.constant 0 : index
    %c0_0 = arith.constant 0 : index
    %0 = vector.load %arg1[%c0, %c0_0] : memref<2x1024xbf16, #tpu.memory_space<vmem>>, vector<2x1024xbf16>
    %c0_1 = arith.constant 0 : index
    %c0_2 = arith.constant 0 : index
    %1 = vector.load %arg2[%c0_1, %c0_2] : memref<1024x512xbf16, #tpu.memory_space<vmem>>, vector<1024x512xbf16>
    %cst = arith.constant dense<0.000000e+00> : vector<2x512xf32>
    %2 = tpu.matmul %0, %1, %cst {dimension_numbers = #tpu.dot_dimension_numbers<[1], [0], [0], [1], [0, 0, 1, 1], [], []>} : vector<2x1024xbf16>, vector<1024x512xbf16>, vector<2x512xf32> -> vector<2x512xf32>
    %c0_3 = arith.constant 0 : index
    %c0_4 = arith.constant 0 : index
    %3 = vector.load %arg3[%c0_3, %c0_4] : memref<1x512xf32, #tpu.memory_space<vmem>>, vector<1x512xf32>
    %4 = vector.broadcast %3 : vector<1x512xf32> to vector<2x512xf32>
    %5 = arith.addf %2, %4 : vector<2x512xf32>
    %cst_5 = arith.constant 0.000000e+00 : f32
    %6 = vector.broadcast %cst_5 : f32 to vector<2x512xf32>
    %7 = arith.maximumf %5, %6 : vector<2x512xf32>
    %8 = arith.truncf %7 : vector<2x512xf32> to vector<2x512xbf16>
    %c0_6 = arith.constant 0 : index
    %c0_7 = arith.constant 0 : index
    %9 = vector.load %arg4[%c0_6, %c0_7] : memref<512x256xbf16, #tpu.memory_space<vmem>>, vector<512x256xbf16>
    %cst_8 = arith.constant dense<0.000000e+00> : vector<2x256xf32>
    %10 = tpu.matmul %8, %9, %cst_8 {dimension_numbers = #tpu.dot_dimension_numbers<[1], [0], [0], [1], [0, 0, 1, 1], [], []>} : vector<2x512xbf16>, vector<512x256xbf16>, vector<2x256xf32> -> vector<2x256xf32>
    %c0_9 = arith.constant 0 : index
    %c0_10 = arith.constant 0 : index
    %11 = vector.load %arg5[%c0_9, %c0_10] : memref<1x256xf32, #tpu.memory_space<vmem>>, vector<1x256xf32>
    %12 = vector.broadcast %11 : vector<1x256xf32> to vector<2x256xf32>
    %13 = arith.addf %10, %12 : vector<2x256xf32>
    %cst_11 = arith.constant 0.000000e+00 : f32
    %14 = vector.broadcast %cst_11 : f32 to vector<2x256xf32>
    %15 = arith.maximumf %13, %14 : vector<2x256xf32>
    %16 = arith.truncf %15 : vector<2x256xf32> to vector<2x256xbf16>
    %c0_12 = arith.constant 0 : index
    %c0_13 = arith.constant 0 : index
    %17 = vector.load %arg6[%c0_12, %c0_13] : memref<256x32xbf16, #tpu.memory_space<vmem>>, vector<256x32xbf16>
    %cst_14 = arith.constant dense<0.000000e+00> : vector<2x32xf32>
    %18 = tpu.matmul %16, %17, %cst_14 {dimension_numbers = #tpu.dot_dimension_numbers<[1], [0], [0], [1], [0, 0, 1, 1], [], []>} : vector<2x256xbf16>, vector<256x32xbf16>, vector<2x32xf32> -> vector<2x32xf32>
    %c0_15 = arith.constant 0 : index
    %c0_16 = arith.constant 0 : index
    %19 = vector.load %arg7[%c0_15, %c0_16] : memref<1x32xf32, #tpu.memory_space<vmem>>, vector<1x32xf32>
    %20 = vector.broadcast %19 : vector<1x32xf32> to vector<2x32xf32>
    %21 = arith.addf %18, %20 : vector<2x32xf32>
    %cst_17 = arith.constant 0.000000e+00 : f32
    %22 = vector.broadcast %cst_17 : f32 to vector<2x32xf32>
    %23 = arith.maximumf %21, %22 : vector<2x32xf32>
    %24 = arith.truncf %23 : vector<2x32xf32> to vector<2x32xbf16>
    %c0_18 = arith.constant 0 : index
    %c0_19 = arith.constant 0 : index
    %25 = vector.load %arg8[%c0_18, %c0_19] : memref<32x128xbf16, #tpu.memory_space<vmem>>, vector<32x128xbf16>
    %cst_20 = arith.constant dense<0.000000e+00> : vector<2x128xf32>
    %26 = tpu.matmul %24, %25, %cst_20 {dimension_numbers = #tpu.dot_dimension_numbers<[1], [0], [0], [1], [0, 0, 1, 1], [], []>} : vector<2x32xbf16>, vector<32x128xbf16>, vector<2x128xf32> -> vector<2x128xf32>
    %c0_21 = arith.constant 0 : index
    %c0_22 = arith.constant 0 : index
    %27 = vector.load %arg9[%c0_21, %c0_22] : memref<1x128xf32, #tpu.memory_space<vmem>>, vector<1x128xf32>
    %28 = vector.broadcast %27 : vector<1x128xf32> to vector<2x128xf32>
    %29 = arith.addf %26, %28 : vector<2x128xf32>
    %c0_23 = arith.constant 0 : index
    %c0_24 = arith.constant 0 : index
    %30 = vector.load %arg10[%c0_23, %c0_24] : memref<2x128xf32, #tpu.memory_space<vmem>>, vector<2x128xf32>
    tpu.vector_store %arg10[%c0_23, %c0_24], %29 {strides = array<i32>} : memref<2x128xf32, #tpu.memory_space<vmem>>, vector<2x128xf32>,
    return
  }
  func.func @transform_0(%arg0: i32) -> (i32, i32) {
    %c0_i32 = arith.constant 0 : i32
    %c0_i32_0 = arith.constant 0 : i32
    return %arg0, %c0_i32 : i32, i32
  }
  func.func @transform_1(%arg0: i32) -> (i32, i32) {
    %c0_i32 = arith.constant 0 : i32
    %c0_i32_0 = arith.constant 0 : i32
    %c0_i32_1 = arith.constant 0 : i32
    return %c0_i32, %c0_i32_0 : i32, i32
  }
  func.func @transform_2(%arg0: i32) -> (i32, i32) {
    %c0_i32 = arith.constant 0 : i32
    %c0_i32_0 = arith.constant 0 : i32
    %c0_i32_1 = arith.constant 0 : i32
    return %c0_i32, %c0_i32_0 : i32, i32
  }
  func.func @transform_3(%arg0: i32) -> (i32, i32) {
    %c0_i32 = arith.constant 0 : i32
    %c0_i32_0 = arith.constant 0 : i32
    %c0_i32_1 = arith.constant 0 : i32
    return %c0_i32, %c0_i32_0 : i32, i32
  }
  func.func @transform_4(%arg0: i32) -> (i32, i32) {
    %c0_i32 = arith.constant 0 : i32
    %c0_i32_0 = arith.constant 0 : i32
    %c0_i32_1 = arith.constant 0 : i32
    return %c0_i32, %c0_i32_0 : i32, i32
  }
  func.func @transform_5(%arg0: i32) -> (i32, i32) {
    %c0_i32 = arith.constant 0 : i32
    %c0_i32_0 = arith.constant 0 : i32
    %c0_i32_1 = arith.constant 0 : i32
    return %c0_i32, %c0_i32_0 : i32, i32
  }
  func.func @transform_6(%arg0: i32) -> (i32, i32) {
    %c0_i32 = arith.constant 0 : i32
    %c0_i32_0 = arith.constant 0 : i32
    %c0_i32_1 = arith.constant 0 : i32
    return %c0_i32, %c0_i32_0 : i32, i32
  }
  func.func @transform_7(%arg0: i32) -> (i32, i32) {
    %c0_i32 = arith.constant 0 : i32
    %c0_i32_0 = arith.constant 0 : i32
    %c0_i32_1 = arith.constant 0 : i32
    return %c0_i32, %c0_i32_0 : i32, i32
  }
  func.func @transform_8(%arg0: i32) -> (i32, i32) {
    %c0_i32 = arith.constant 0 : i32
    %c0_i32_0 = arith.constant 0 : i32
    %c0_i32_1 = arith.constant 0 : i32
    return %c0_i32, %c0_i32_0 : i32, i32
  }
  func.func @transform_9(%arg0: i32) -> (i32, i32) {
    %c0_i32 = arith.constant 0 : i32
    %c0_i32_0 = arith.constant 0 : i32
    return %arg0, %c0_i32 : i32, i32
  }
}

</mosaic_0001>

<llo_original>
// kernel: sequential_vae_forward.1
$region0: #{sequential_vae_forward.1}
  #allocation0 [shape = 'u32[]', space=smem, size = 0x4, offset = 0x4, fixed_abs, tag = 'smem constant byte address 0x4 - core index']
  #allocation1 [shape = 'u32[72,128]{1,0:T(1,128)}', space=vmem, size = 0x9000, scoped, tag = 'internal scratch']
  %s0 = inlined_call_operand.vmem [shape: bf16[2,1024], index: 0, kind: input, shape index: {}]
  %s1 = inlined_call_operand.hbm [shape: bf16[1024,512], index: 1, kind: input, shape index: {}]
  %s2 = inlined_call_operand.vmem [shape: f32[1,512], index: 2, kind: input, shape index: {}]
  %s3 = inlined_call_operand.hbm [shape: bf16[512,256], index: 3, kind: input, shape index: {}]
  %s4 = inlined_call_operand.vmem [shape: f32[1,256], index: 4, kind: input, shape index: {}]
  %s5 = inlined_call_operand.vmem [shape: bf16[256,32], index: 5, kind: input, shape index: {}]
  %s6 = inlined_call_operand.vmem [shape: f32[1,32], index: 6, kind: input, shape index: {}]
  %s7 = inlined_call_operand.vmem [shape: bf16[32,128], index: 7, kind: input, shape index: {}]
  %s8 = inlined_call_operand.vmem [shape: f32[1,128], index: 8, kind: input, shape index: {}]
  %s9 = inlined_call_operand.hbm [shape: f32[2,128], index: 9, kind: output, shape index: {}]
  %s10 = sld [smem:[#allocation0]]
  $region54: #{sequential_vae_forward.1} parent=0
    _
  %s12 = ssub.s32 1, %s10
  %s13 = scalar_select 0, %s12, %s10
  $region1: #{sequential_vae_forward.1} parent=0
    #allocation2 [shape = 'u8[1048576]{0}', space=vmem, size = 0x100000, scoped, tag = 'input window, operand 1, single buffered']
    #allocation3 [shape = 's32[1]{0}', space=sflag, size = 0x4, scoped, tag = 'scoped memory for sequential_vae_forward.1']
    #allocation4 [shape = 's32[1]{0}', space=sflag, size = 0x4, scoped, tag = 'scoped memory for sequential_vae_forward.1']
    #allocation5 [shape = 'u8[262144]{0}', space=vmem, size = 0x40000, scoped, tag = 'input window, operand 3, single buffered']
    #allocation6 [shape = 's32[1]{0}', space=sflag, size = 0x4, scoped, tag = 'scoped memory for sequential_vae_forward.1']
    #allocation7 [shape = 'u8[1024]{0}', space=vmem, size = 0x400, scoped, tag = 'output window, operand 0, single buffered']
    %14 = vsyncpa [#allocation3], 0
    %15 = vsyncpa [#allocation6], 0
    %16 = vsyncpa [#allocation4], 0
    // Predicated region
    $region2: #{sequential_vae_forward.1} parent=1 // pred_check
      _
    $region3: #{sequential_vae_forward.1} parent=1 // pred_check_branch
      %18 = sbr.rel (0) target = $region5
    $region4: #{sequential_vae_forward.1} parent=1 // pred_region
      _
    $region5: #{sequential_vae_forward.1} parent=1 // pred_fallthru
      _
    // Predicated region
    $region6: #{sequential_vae_forward.1} parent=1 // pred_check
      _
    $region7: #{sequential_vae_forward.1} parent=1 // pred_check_branch
      %20 = sbr.rel (0) target = $region9
    $region8: #{sequential_vae_forward.1} parent=1 // pred_region
      %22 = vsyncadd [#allocation3], 0
      %s23 = sshll.u32 %s1, 4
      %s24 = int_to_ptr.hbm [resolvable:$true] %s23
      %s25 = sshll.u32 [#allocation2], 4
      %s26 = int_to_ptr.vmem [resolvable:$true] %s25
      %31 = dma.hbm_to_vmem [thread:$0]  %s24, 32768, %s26, [#allocation3], 256, 256, 16
    $region9: #{sequential_vae_forward.1} parent=1 // pred_fallthru
      _
    // Predicated region
    $region10: #{sequential_vae_forward.1} parent=1 // pred_check
      _
    $region11: #{sequential_vae_forward.1} parent=1 // pred_check_branch
      %33 = sbr.rel (0) target = $region13
    $region12: #{sequential_vae_forward.1} parent=1 // pred_region
      _
    $region13: #{sequential_vae_forward.1} parent=1 // pred_fallthru
      _
    // Predicated region
    $region14: #{sequential_vae_forward.1} parent=1 // pred_check
      _
    $region15: #{sequential_vae_forward.1} parent=1 // pred_check_branch
      %35 = sbr.rel (0) target = $region17
    $region16: #{sequential_vae_forward.1} parent=1 // pred_region
      %37 = vsyncadd [#allocation6], 0
      %s38 = sshll.u32 %s3, 4
      %s39 = int_to_ptr.hbm [resolvable:$true] %s38
      %s40 = sshll.u32 [#allocation5], 4
      %s41 = int_to_ptr.vmem [resolvable:$true] %s40
      %46 = dma.hbm_to_vmem [thread:$0]  %s39, 8192, %s41, [#allocation6], 128, 128, 8
    $region17: #{sequential_vae_forward.1} parent=1 // pred_fallthru
      _
    // Predicated region
    $region18: #{sequential_vae_forward.1} parent=1 // pred_check
      _
    $region19: #{sequential_vae_forward.1} parent=1 // pred_check_branch
      %48 = sbr.rel (0) target = $region21
    $region20: #{sequential_vae_forward.1} parent=1 // pred_region
      _
    $region21: #{sequential_vae_forward.1} parent=1 // pred_fallthru
      _
    // Predicated region
    $region22: #{sequential_vae_forward.1} parent=1 // pred_check
      _
    $region23: #{sequential_vae_forward.1} parent=1 // pred_check_branch
      %50 = sbr.rel (0) target = $region25
    $region24: #{sequential_vae_forward.1} parent=1 // pred_region
      _
    $region25: #{sequential_vae_forward.1} parent=1 // pred_fallthru
      _
    // Predicated region
    $region26: #{sequential_vae_forward.1} parent=1 // pred_check
      _
    $region27: #{sequential_vae_forward.1} parent=1 // pred_check_branch
      %52 = sbr.rel (0) target = $region29
    $region28: #{sequential_vae_forward.1} parent=1 // pred_region
      _
    $region29: #{sequential_vae_forward.1} parent=1 // pred_fallthru
      _
    // Predicated region
    $region30: #{sequential_vae_forward.1} parent=1 // pred_check
      _
    $region31: #{sequential_vae_forward.1} parent=1 // pred_check_branch
      %54 = sbr.rel (0) target = $region33
    $region32: #{sequential_vae_forward.1} parent=1 // pred_region
      _
    $region33: #{sequential_vae_forward.1} parent=1 // pred_fallthru
      _
    // Predicated region
    $region34: #{sequential_vae_forward.1} parent=1 // pred_check
      _
    $region35: #{sequential_vae_forward.1} parent=1 // pred_check_branch
      %56 = sbr.rel (0) target = $region37
    $region36: #{sequential_vae_forward.1} parent=1 // pred_region
      _
    $region37: #{sequential_vae_forward.1} parent=1 // pred_fallthru
      _
    // Predicated region
    $region38: #{sequential_vae_forward.1} parent=1 // pred_check
      _
    $region39: #{sequential_vae_forward.1} parent=1 // pred_check_branch
      %58 = sbr.rel (0) target = $region41
    $region40: #{sequential_vae_forward.1} parent=1 // pred_region
      %60 = dma.done [#allocation3], 32768
    $region41: #{sequential_vae_forward.1} parent=1 // pred_fallthru
      _
    // Predicated region
    $region42: #{sequential_vae_forward.1} parent=1 // pred_check
      _
    $region43: #{sequential_vae_forward.1} parent=1 // pred_check_branch
      %62 = sbr.rel (0) target = $region45
    $region44: #{sequential_vae_forward.1} parent=1 // pred_region
      %64 = dma.done [#allocation6], 8192
    $region45: #{sequential_vae_forward.1} parent=1 // pred_fallthru
      _
    %v66 = vld [vmem:[%s0] sm:$0xff]
    %v67 = vld [vmem:[#allocation2] sm:$0xff]
    %v68 = vld [vmem:[#allocation2 + $0x8] sm:$0xff]
    %v69 = vld [vmem:[#allocation2 + $0x10] sm:$0xff]
    %v70 = vld [vmem:[#allocation2 + $0x18] sm:$0xff]
    %v71 = vld [vmem:[#allocation2 + $0x20] sm:$0xff]
    %v72 = vld [vmem:[#allocation2 + $0x28] sm:$0xff]
    %v73 = vld [vmem:[#allocation2 + $0x30] sm:$0xff]
    %v74 = vld [vmem:[#allocation2 + $0x38] sm:$0xff]
    %v75 = vld [vmem:[#allocation2 + $0x40] sm:$0xff]
    %v76 = vld [vmem:[#allocation2 + $0x48] sm:$0xff]
    %v77 = vld [vmem:[#allocation2 + $0x50] sm:$0xff]
    %v78 = vld [vmem:[#allocation2 + $0x58] sm:$0xff]
    %v79 = vld [vmem:[#allocation2 + $0x60] sm:$0xff]
    %v80 = vld [vmem:[#allocation2 + $0x68] sm:$0xff]
    %v81 = vld [vmem:[#allocation2 + $0x70] sm:$0xff]
    %v82 = vld [vmem:[#allocation2 + $0x78] sm:$0xff]
    %v83 = vld [vmem:[#allocation2 + $0x80] sm:$0xff]
    %v84 = vld [vmem:[#allocation2 + $0x88] sm:$0xff]
    %v85 = vld [vmem:[#allocation2 + $0x90] sm:$0xff]
    %v86 = vld [vmem:[#allocation2 + $0x98] sm:$0xff]
    %v87 = vld [vmem:[#allocation2 + $0xa0] sm:$0xff]
    %v88 = vld [vmem:[#allocation2 + $0xa8] sm:$0xff]
    %v89 = vld [vmem:[#allocation2 + $0xb0] sm:$0xff]
    %v90 = vld [vmem:[#allocation2 + $0xb8] sm:$0xff]
    %v91 = vld [vmem:[#allocation2 + $0xc0] sm:$0xff]
    %v92 = vld [vmem:[#allocation2 + $0xc8] sm:$0xff]
    %v93 = vld [vmem:[#allocation2 + $0xd0] sm:$0xff]
    %v94 = vld [vmem:[#allocation2 + $0xd8] sm:$0xff]
    %v95 = vld [vmem:[#allocation2 + $0xe0] sm:$0xff]
    %v96 = vld [vmem:[#allocation2 + $0xe8] sm:$0xff]
    %v97 = vld [vmem:[#allocation2 + $0xf0] sm:$0xff]
    %v98 = vld [vmem:[#allocation2 + $0xf8] sm:$0xff]
    %v99 = vld [vmem:[#allocation2 + $0x100] sm:$0xff]
    %v100 = vld [vmem:[#allocation2 + $0x108] sm:$0xff]
    %v101 = vld [vmem:[#allocation2 + $0x110] sm:$0xff]
    %v102 = vld [vmem:[#allocation2 + $0x118] sm:$0xff]
    %v103 = vld [vmem:[#allocation2 + $0x120] sm:$0xff]
    %v104 = vld [vmem:[#allocation2 + $0x128] sm:$0xff]
    %v105 = vld [vmem:[#allocation2 + $0x130] sm:$0xff]
    %v106 = vld [vmem:[#allocation2 + $0x138] sm:$0xff]
    %v107 = vld [vmem:[#allocation2 + $0x140] sm:$0xff]
    %v108 = vld [vmem:[#allocation2 + $0x148] sm:$0xff]
    %v109 = vld [vmem:[#allocation2 + $0x150] sm:$0xff]
    %v110 = vld [vmem:[#allocation2 + $0x158] sm:$0xff]
    %v111 = vld [vmem:[#allocation2 + $0x160] sm:$0xff]
    %v112 = vld [vmem:[#allocation2 + $0x168] sm:$0xff]
    %v113 = vld [vmem:[#allocation2 + $0x170] sm:$0xff]
    %v114 = vld [vmem:[#allocation2 + $0x178] sm:$0xff]
    %v115 = vld [vmem:[#allocation2 + $0x180] sm:$0xff]
    %v116 = vld [vmem:[#allocation2 + $0x188] sm:$0xff]
    %v117 = vld [vmem:[#allocation2 + $0x190] sm:$0xff]
    %v118 = vld [vmem:[#allocation2 + $0x198] sm:$0xff]
    %v119 = vld [vmem:[#allocation2 + $0x1a0] sm:$0xff]
    %v120 = vld [vmem:[#allocation2 + $0x1a8] sm:$0xff]
    %v121 = vld [vmem:[#allocation2 + $0x1b0] sm:$0xff]
    %v122 = vld [vmem:[#allocation2 + $0x1b8] sm:$0xff]
    %v123 = vld [vmem:[#allocation2 + $0x1c0] sm:$0xff]
    %v124 = vld [vmem:[#allocation2 + $0x1c8] sm:$0xff]
    %v125 = vld [vmem:[#allocation2 + $0x1d0] sm:$0xff]
    %v126 = vld [vmem:[#allocation2 + $0x1d8] sm:$0xff]
    %v127 = vld [vmem:[#allocation2 + $0x1e0] sm:$0xff]
    %v128 = vld [vmem:[#allocation2 + $0x1e8] sm:$0xff]
    %v129 = vld [vmem:[#allocation2 + $0x1f0] sm:$0xff]
    %v130 = vld [vmem:[#allocation2 + $0x1f8] sm:$0xff]
    %v131 = vld [vmem:[#allocation2 + $0x200] sm:$0xff]
    %v132 = vld [vmem:[#allocation2 + $0x208] sm:$0xff]
    %v133 = vld [vmem:[#allocation2 + $0x210] sm:$0xff]
    %v134 = vld [vmem:[#allocation2 + $0x218] sm:$0xff]
    %v135 = vld [vmem:[#allocation2 + $0x220] sm:$0xff]
    %v136 = vld [vmem:[#allocation2 + $0x228] sm:$0xff]
    %v137 = vld [vmem:[#allocation2 + $0x230] sm:$0xff]
    %v138 = vld [vmem:[#allocation2 + $0x238] sm:$0xff]
    %v139 = vld [vmem:[#allocation2 + $0x240] sm:$0xff]
    %v140 = vld [vmem:[#allocation2 + $0x248] sm:$0xff]
    %v141 = vld [vmem:[#allocation2 + $0x250] sm:$0xff]
    %v142 = vld [vmem:[#allocation2 + $0x258] sm:$0xff]
    %v143 = vld [vmem:[#allocation2 + $0x260] sm:$0xff]
    %v144 = vld [vmem:[#allocation2 + $0x268] sm:$0xff]
    %v145 = vld [vmem:[#allocation2 + $0x270] sm:$0xff]
    %v146 = vld [vmem:[#allocation2 + $0x278] sm:$0xff]
    %v147 = vld [vmem:[#allocation2 + $0x280] sm:$0xff]
    %v148 = vld [vmem:[#allocation2 + $0x288] sm:$0xff]
    %v149 = vld [vmem:[#allocation2 + $0x290] sm:$0xff]
    %v150 = vld [vmem:[#allocation2 + $0x298] sm:$0xff]
    %v151 = vld [vmem:[#allocation2 + $0x2a0] sm:$0xff]
    %v152 = vld [vmem:[#allocation2 + $0x2a8] sm:$0xff]
    %v153 = vld [vmem:[#allocation2 + $0x2b0] sm:$0xff]
    %v154 = vld [vmem:[#allocation2 + $0x2b8] sm:$0xff]
    %v155 = vld [vmem:[#allocation2 + $0x2c0] sm:$0xff]
    %v156 = vld [vmem:[#allocation2 + $0x2c8] sm:$0xff]
    %v157 = vld [vmem:[#allocation2 + $0x2d0] sm:$0xff]
    %v158 = vld [vmem:[#allocation2 + $0x2d8] sm:$0xff]
    %v159 = vld [vmem:[#allocation2 + $0x2e0] sm:$0xff]
    %v160 = vld [vmem:[#allocation2 + $0x2e8] sm:$0xff]
    %v161 = vld [vmem:[#allocation2 + $0x2f0] sm:$0xff]
    %v162 = vld [vmem:[#allocation2 + $0x2f8] sm:$0xff]
    %v163 = vld [vmem:[#allocation2 + $0x300] sm:$0xff]
    %v164 = vld [vmem:[#allocation2 + $0x308] sm:$0xff]
    %v165 = vld [vmem:[#allocation2 + $0x310] sm:$0xff]
    %v166 = vld [vmem:[#allocation2 + $0x318] sm:$0xff]
    %v167 = vld [vmem:[#allocation2 + $0x320] sm:$0xff]
    %v168 = vld [vmem:[#allocation2 + $0x328] sm:$0xff]
    %v169 = vld [vmem:[#allocation2 + $0x330] sm:$0xff]
    %v170 = vld [vmem:[#allocation2 + $0x338] sm:$0xff]
    %v171 = vld [vmem:[#allocation2 + $0x340] sm:$0xff]
    %v172 = vld [vmem:[#allocation2 + $0x348] sm:$0xff]
    %v173 = vld [vmem:[#allocation2 + $0x350] sm:$0xff]
    %v174 = vld [vmem:[#allocation2 + $0x358] sm:$0xff]
    %v175 = vld [vmem:[#allocation2 + $0x360] sm:$0xff]
    %v176 = vld [vmem:[#allocation2 + $0x368] sm:$0xff]
    %v177 = vld [vmem:[#allocation2 + $0x370] sm:$0xff]
    %v178 = vld [vmem:[#allocation2 + $0x378] sm:$0xff]
    %v179 = vld [vmem:[#allocation2 + $0x380] sm:$0xff]
    %v180 = vld [vmem:[#allocation2 + $0x388] sm:$0xff]
    %v181 = vld [vmem:[#allocation2 + $0x390] sm:$0xff]
    %v182 = vld [vmem:[#allocation2 + $0x398] sm:$0xff]
    %v183 = vld [vmem:[#allocation2 + $0x3a0] sm:$0xff]
    %v184 = vld [vmem:[#allocation2 + $0x3a8] sm:$0xff]
    %v185 = vld [vmem:[#allocation2 + $0x3b0] sm:$0xff]
    %v186 = vld [vmem:[#allocation2 + $0x3b8] sm:$0xff]
    %v187 = vld [vmem:[#allocation2 + $0x3c0] sm:$0xff]
    %v188 = vld [vmem:[#allocation2 + $0x3c8] sm:$0xff]
    %v189 = vld [vmem:[#allocation2 + $0x3d0] sm:$0xff]
    %v190 = vld [vmem:[#allocation2 + $0x3d8] sm:$0xff]
    %v191 = vld [vmem:[#allocation2 + $0x3e0] sm:$0xff]
    %v192 = vld [vmem:[#allocation2 + $0x3e8] sm:$0xff]
    %v193 = vld [vmem:[#allocation2 + $0x3f0] sm:$0xff]
    %v194 = vld [vmem:[#allocation2 + $0x3f8] sm:$0xff]
    %v195 = vld [vmem:[#allocation2 + $0x400] sm:$0xff]
    %v196 = vld [vmem:[#allocation2 + $0x408] sm:$0xff]
    %v197 = vld [vmem:[#allocation2 + $0x410] sm:$0xff]
    %v198 = vld [vmem:[#allocation2 + $0x418] sm:$0xff]
    %v199 = vld [vmem:[#allocation2 + $0x420] sm:$0xff]
    %v200 = vld [vmem:[#allocation2 + $0x428] sm:$0xff]
    %v201 = vld [vmem:[#allocation2 + $0x430] sm:$0xff]
    %v202 = vld [vmem:[#allocation2 + $0x438] sm:$0xff]
    %v203 = vld [vmem:[#allocation2 + $0x440] sm:$0xff]
    %v204 = vld [vmem:[#allocation2 + $0x448] sm:$0xff]
    %v205 = vld [vmem:[#allocation2 + $0x450] sm:$0xff]
    %v206 = vld [vmem:[#allocation2 + $0x458] sm:$0xff]
    %v207 = vld [vmem:[#allocation2 + $0x460] sm:$0xff]
    %v208 = vld [vmem:[#allocation2 + $0x468] sm:$0xff]
    %v209 = vld [vmem:[#allocation2 + $0x470] sm:$0xff]
    %v210 = vld [vmem:[#allocation2 + $0x478] sm:$0xff]
    %v211 = vld [vmem:[#allocation2 + $0x480] sm:$0xff]
    %v212 = vld [vmem:[#allocation2 + $0x488] sm:$0xff]
    %v213 = vld [vmem:[#allocation2 + $0x490] sm:$0xff]
    %v214 = vld [vmem:[#allocation2 + $0x498] sm:$0xff]
    %v215 = vld [vmem:[#allocation2 + $0x4a0] sm:$0xff]
    %v216 = vld [vmem:[#allocation2 + $0x4a8] sm:$0xff]
    %v217 = vld [vmem:[#allocation2 + $0x4b0] sm:$0xff]
    %v218 = vld [vmem:[#allocation2 + $0x4b8] sm:$0xff]
    %v219 = vld [vmem:[#allocation2 + $0x4c0] sm:$0xff]
    %v220 = vld [vmem:[#allocation2 + $0x4c8] sm:$0xff]
    %v221 = vld [vmem:[#allocation2 + $0x4d0] sm:$0xff]
    %v222 = vld [vmem:[#allocation2 + $0x4d8] sm:$0xff]
    %v223 = vld [vmem:[#allocation2 + $0x4e0] sm:$0xff]
    %v224 = vld [vmem:[#allocation2 + $0x4e8] sm:$0xff]
    %v225 = vld [vmem:[#allocation2 + $0x4f0] sm:$0xff]
    %v226 = vld [vmem:[#allocation2 + $0x4f8] sm:$0xff]
    %v227 = vld [vmem:[#allocation2 + $0x500] sm:$0xff]
    %v228 = vld [vmem:[#allocation2 + $0x508] sm:$0xff]
    %v229 = vld [vmem:[#allocation2 + $0x510] sm:$0xff]
    %v230 = vld [vmem:[#allocation2 + $0x518] sm:$0xff]
    %v231 = vld [vmem:[#allocation2 + $0x520] sm:$0xff]
    %v232 = vld [vmem:[#allocation2 + $0x528] sm:$0xff]
    %v233 = vld [vmem:[#allocation2 + $0x530] sm:$0xff]
    %v234 = vld [vmem:[#allocation2 + $0x538] sm:$0xff]
    %v235 = vld [vmem:[#allocation2 + $0x540] sm:$0xff]
    %v236 = vld [vmem:[#allocation2 + $0x548] sm:$0xff]
    %v237 = vld [vmem:[#allocation2 + $0x550] sm:$0xff]
    %v238 = vld [vmem:[#allocation2 + $0x558] sm:$0xff]
    %v239 = vld [vmem:[#allocation2 + $0x560] sm:$0xff]
    %v240 = vld [vmem:[#allocation2 + $0x568] sm:$0xff]
    %v241 = vld [vmem:[#allocation2 + $0x570] sm:$0xff]
    %v242 = vld [vmem:[#allocation2 + $0x578] sm:$0xff]
    %v243 = vld [vmem:[#allocation2 + $0x580] sm:$0xff]
    %v244 = vld [vmem:[#allocation2 + $0x588] sm:$0xff]
    %v245 = vld [vmem:[#allocation2 + $0x590] sm:$0xff]
    %v246 = vld [vmem:[#allocation2 + $0x598] sm:$0xff]
    %v247 = vld [vmem:[#allocation2 + $0x5a0] sm:$0xff]
    %v248 = vld [vmem:[#allocation2 + $0x5a8] sm:$0xff]
    %v249 = vld [vmem:[#allocation2 + $0x5b0] sm:$0xff]
    %v250 = vld [vmem:[#allocation2 + $0x5b8] sm:$0xff]
    %v251 = vld [vmem:[#allocation2 + $0x5c0] sm:$0xff]
    %v252 = vld [vmem:[#allocation2 + $0x5c8] sm:$0xff]
    %v253 = vld [vmem:[#allocation2 + $0x5d0] sm:$0xff]
    %v254 = vld [vmem:[#allocation2 + $0x5d8] sm:$0xff]
    %v255 = vld [vmem:[#allocation2 + $0x5e0] sm:$0xff]
    %v256 = vld [vmem:[#allocation2 + $0x5e8] sm:$0xff]
    %v257 = vld [vmem:[#allocation2 + $0x5f0] sm:$0xff]
    %v258 = vld [vmem:[#allocation2 + $0x5f8] sm:$0xff]
    %v259 = vld [vmem:[#allocation2 + $0x600] sm:$0xff]
    %v260 = vld [vmem:[#allocation2 + $0x608] sm:$0xff]
    %v261 = vld [vmem:[#allocation2 + $0x610] sm:$0xff]
    %v262 = vld [vmem:[#allocation2 + $0x618] sm:$0xff]
    %v263 = vld [vmem:[#allocation2 + $0x620] sm:$0xff]
    %v264 = vld [vmem:[#allocation2 + $0x628] sm:$0xff]
    %v265 = vld [vmem:[#allocation2 + $0x630] sm:$0xff]
    %v266 = vld [vmem:[#allocation2 + $0x638] sm:$0xff]
    %v267 = vld [vmem:[#allocation2 + $0x640] sm:$0xff]
    %v268 = vld [vmem:[#allocation2 + $0x648] sm:$0xff]
    %v269 = vld [vmem:[#allocation2 + $0x650] sm:$0xff]
    %v270 = vld [vmem:[#allocation2 + $0x658] sm:$0xff]
    %v271 = vld [vmem:[#allocation2 + $0x660] sm:$0xff]
    %v272 = vld [vmem:[#allocation2 + $0x668] sm:$0xff]
    %v273 = vld [vmem:[#allocation2 + $0x670] sm:$0xff]
    %v274 = vld [vmem:[#allocation2 + $0x678] sm:$0xff]
    %v275 = vld [vmem:[#allocation2 + $0x680] sm:$0xff]
    %v276 = vld [vmem:[#allocation2 + $0x688] sm:$0xff]
    %v277 = vld [vmem:[#allocation2 + $0x690] sm:$0xff]
    %v278 = vld [vmem:[#allocation2 + $0x698] sm:$0xff]
    %v279 = vld [vmem:[#allocation2 + $0x6a0] sm:$0xff]
    %v280 = vld [vmem:[#allocation2 + $0x6a8] sm:$0xff]
    %v281 = vld [vmem:[#allocation2 + $0x6b0] sm:$0xff]
    %v282 = vld [vmem:[#allocation2 + $0x6b8] sm:$0xff]
    %v283 = vld [vmem:[#allocation2 + $0x6c0] sm:$0xff]
    %v284 = vld [vmem:[#allocation2 + $0x6c8] sm:$0xff]
    %v285 = vld [vmem:[#allocation2 + $0x6d0] sm:$0xff]
    %v286 = vld [vmem:[#allocation2 + $0x6d8] sm:$0xff]
    %v287 = vld [vmem:[#allocation2 + $0x6e0] sm:$0xff]
    %v288 = vld [vmem:[#allocation2 + $0x6e8] sm:$0xff]
    %v289 = vld [vmem:[#allocation2 + $0x6f0] sm:$0xff]
    %v290 = vld [vmem:[#allocation2 + $0x6f8] sm:$0xff]
    %v291 = vld [vmem:[#allocation2 + $0x700] sm:$0xff]
    %v292 = vld [vmem:[#allocation2 + $0x708] sm:$0xff]
    %v293 = vld [vmem:[#allocation2 + $0x710] sm:$0xff]
    %v294 = vld [vmem:[#allocation2 + $0x718] sm:$0xff]
    %v295 = vld [vmem:[#allocation2 + $0x720] sm:$0xff]
    %v296 = vld [vmem:[#allocation2 + $0x728] sm:$0xff]
    %v297 = vld [vmem:[#allocation2 + $0x730] sm:$0xff]
    %v298 = vld [vmem:[#allocation2 + $0x738] sm:$0xff]
    %v299 = vld [vmem:[#allocation2 + $0x740] sm:$0xff]
    %v300 = vld [vmem:[#allocation2 + $0x748] sm:$0xff]
    %v301 = vld [vmem:[#allocation2 + $0x750] sm:$0xff]
    %v302 = vld [vmem:[#allocation2 + $0x758] sm:$0xff]
    %v303 = vld [vmem:[#allocation2 + $0x760] sm:$0xff]
    %v304 = vld [vmem:[#allocation2 + $0x768] sm:$0xff]
    %v305 = vld [vmem:[#allocation2 + $0x770] sm:$0xff]
    %v306 = vld [vmem:[#allocation2 + $0x778] sm:$0xff]
    %v307 = vld [vmem:[#allocation2 + $0x780] sm:$0xff]
    %v308 = vld [vmem:[#allocation2 + $0x788] sm:$0xff]
    %v309 = vld [vmem:[#allocation2 + $0x790] sm:$0xff]
    %v310 = vld [vmem:[#allocation2 + $0x798] sm:$0xff]
    %v311 = vld [vmem:[#allocation2 + $0x7a0] sm:$0xff]
    %v312 = vld [vmem:[#allocation2 + $0x7a8] sm:$0xff]
    %v313 = vld [vmem:[#allocation2 + $0x7b0] sm:$0xff]
    %v314 = vld [vmem:[#allocation2 + $0x7b8] sm:$0xff]
    %v315 = vld [vmem:[#allocation2 + $0x7c0] sm:$0xff]
    %v316 = vld [vmem:[#allocation2 + $0x7c8] sm:$0xff]
    %v317 = vld [vmem:[#allocation2 + $0x7d0] sm:$0xff]
    %v318 = vld [vmem:[#allocation2 + $0x7d8] sm:$0xff]
    %v319 = vld [vmem:[#allocation2 + $0x7e0] sm:$0xff]
    %v320 = vld [vmem:[#allocation2 + $0x7e8] sm:$0xff]
    %v321 = vld [vmem:[#allocation2 + $0x7f0] sm:$0xff]
    %v322 = vld [vmem:[#allocation2 + $0x7f8] sm:$0xff]
    %v323 = vld [vmem:[%s2] sm:$0xf]
    %v325 = vperm.slane %v323, 0
    %v326 = vperm.slane %v323, 1
    %v327 = vperm.slane %v323, 2
    %v328 = vperm.slane %v323, 3
    %334 = vst [vmem:[#allocation1] ss:$9 sm:$0xff] %v66
    %v335 = vld [vmem:[#allocation1] sm:$0xff]
    %v336 = vld [vmem:[#allocation1 + $0x9] sm:$0xff]
    %v337 = vld [vmem:[#allocation1 + $0x12] sm:$0xff]
    %v338 = vld [vmem:[#allocation1 + $0x1b] sm:$0xff]
    %v339 = vld [vmem:[#allocation1 + $0x24] sm:$0xff]
    %v340 = vld [vmem:[#allocation1 + $0x2d] sm:$0xff]
    %v341 = vld [vmem:[#allocation1 + $0x36] sm:$0xff]
    %v342 = vld [vmem:[#allocation1 + $0x3f] sm:$0xff]
    %v607 = vunpack.c.l.b16 %v67
    %v608 = vunpack.c.h.b16 %v67
    %v609 = vunpack.c.l.b16 %v68
    %v610 = vunpack.c.h.b16 %v68
    %v611 = vunpack.c.l.b16 %v69
    %v612 = vunpack.c.h.b16 %v69
    %v613 = vunpack.c.l.b16 %v70
    %v614 = vunpack.c.h.b16 %v70
    %v615 = vunpack.c.l.b16 %v71
    %v616 = vunpack.c.h.b16 %v71
    %v617 = vunpack.c.l.b16 %v72
    %v618 = vunpack.c.h.b16 %v72
    %v619 = vunpack.c.l.b16 %v73
    %v620 = vunpack.c.h.b16 %v73
    %v621 = vunpack.c.l.b16 %v74
    %v622 = vunpack.c.h.b16 %v74
    %v623 = vunpack.c.l.b16 %v75
    %v624 = vunpack.c.h.b16 %v75
    %v625 = vunpack.c.l.b16 %v76
    %v626 = vunpack.c.h.b16 %v76
    %v627 = vunpack.c.l.b16 %v77
    %v628 = vunpack.c.h.b16 %v77
    %v629 = vunpack.c.l.b16 %v78
    %v630 = vunpack.c.h.b16 %v78
    %v631 = vunpack.c.l.b16 %v79
    %v632 = vunpack.c.h.b16 %v79
    %v633 = vunpack.c.l.b16 %v80
    %v634 = vunpack.c.h.b16 %v80
    %v635 = vunpack.c.l.b16 %v81
    %v636 = vunpack.c.h.b16 %v81
    %v637 = vunpack.c.l.b16 %v82
    %v638 = vunpack.c.h.b16 %v82
    %v639 = vunpack.c.l.b16 %v83
    %v640 = vunpack.c.h.b16 %v83
    %v641 = vunpack.c.l.b16 %v84
    %v642 = vunpack.c.h.b16 %v84
    %v643 = vunpack.c.l.b16 %v85
    %v644 = vunpack.c.h.b16 %v85
    %v645 = vunpack.c.l.b16 %v86
    %v646 = vunpack.c.h.b16 %v86
    %v647 = vunpack.c.l.b16 %v87
    %v648 = vunpack.c.h.b16 %v87
    %v649 = vunpack.c.l.b16 %v88
    %v650 = vunpack.c.h.b16 %v88
    %v651 = vunpack.c.l.b16 %v89
    %v652 = vunpack.c.h.b16 %v89
    %v653 = vunpack.c.l.b16 %v90
    %v654 = vunpack.c.h.b16 %v90
    %v655 = vunpack.c.l.b16 %v91
    %v656 = vunpack.c.h.b16 %v91
    %v657 = vunpack.c.l.b16 %v92
    %v658 = vunpack.c.h.b16 %v92
    %v659 = vunpack.c.l.b16 %v93
    %v660 = vunpack.c.h.b16 %v93
    %v661 = vunpack.c.l.b16 %v94
    %v662 = vunpack.c.h.b16 %v94
    %v663 = vunpack.c.l.b16 %v95
    %v664 = vunpack.c.h.b16 %v95
    %v665 = vunpack.c.l.b16 %v96
    %v666 = vunpack.c.h.b16 %v96
    %v667 = vunpack.c.l.b16 %v97
    %v668 = vunpack.c.h.b16 %v97
    %v669 = vunpack.c.l.b16 %v98
    %v670 = vunpack.c.h.b16 %v98
    %v671 = vunpack.c.l.b16 %v99
    %v672 = vunpack.c.h.b16 %v99
    %v673 = vunpack.c.l.b16 %v100
    %v674 = vunpack.c.h.b16 %v100
    %v675 = vunpack.c.l.b16 %v101
    %v676 = vunpack.c.h.b16 %v101
    %v677 = vunpack.c.l.b16 %v102
    %v678 = vunpack.c.h.b16 %v102
    %v679 = vunpack.c.l.b16 %v103
    %v680 = vunpack.c.h.b16 %v103
    %v681 = vunpack.c.l.b16 %v104
    %v682 = vunpack.c.h.b16 %v104
    %v683 = vunpack.c.l.b16 %v105
    %v684 = vunpack.c.h.b16 %v105
    %v685 = vunpack.c.l.b16 %v106
    %v686 = vunpack.c.h.b16 %v106
    %v687 = vunpack.c.l.b16 %v107
    %v688 = vunpack.c.h.b16 %v107
    %v689 = vunpack.c.l.b16 %v108
    %v690 = vunpack.c.h.b16 %v108
    %v691 = vunpack.c.l.b16 %v109
    %v692 = vunpack.c.h.b16 %v109
    %v693 = vunpack.c.l.b16 %v110
    %v694 = vunpack.c.h.b16 %v110
    %v695 = vunpack.c.l.b16 %v111
    %v696 = vunpack.c.h.b16 %v111
    %v697 = vunpack.c.l.b16 %v112
    %v698 = vunpack.c.h.b16 %v112
    %v699 = vunpack.c.l.b16 %v113
    %v700 = vunpack.c.h.b16 %v113
    %v701 = vunpack.c.l.b16 %v114
    %v702 = vunpack.c.h.b16 %v114
    %v703 = vunpack.c.l.b16 %v115
    %v704 = vunpack.c.h.b16 %v115
    %v705 = vunpack.c.l.b16 %v116
    %v706 = vunpack.c.h.b16 %v116
    %v707 = vunpack.c.l.b16 %v117
    %v708 = vunpack.c.h.b16 %v117
    %v709 = vunpack.c.l.b16 %v118
    %v710 = vunpack.c.h.b16 %v118
    %v711 = vunpack.c.l.b16 %v119
    %v712 = vunpack.c.h.b16 %v119
    %v713 = vunpack.c.l.b16 %v120
    %v714 = vunpack.c.h.b16 %v120
    %v715 = vunpack.c.l.b16 %v121
    %v716 = vunpack.c.h.b16 %v121
    %v717 = vunpack.c.l.b16 %v122
    %v718 = vunpack.c.h.b16 %v122
    %v719 = vunpack.c.l.b16 %v123
    %v720 = vunpack.c.h.b16 %v123
    %v721 = vunpack.c.l.b16 %v124
    %v722 = vunpack.c.h.b16 %v124
    %v723 = vunpack.c.l.b16 %v125
    %v724 = vunpack.c.h.b16 %v125
    %v725 = vunpack.c.l.b16 %v126
    %v726 = vunpack.c.h.b16 %v126
    %v727 = vunpack.c.l.b16 %v127
    %v728 = vunpack.c.h.b16 %v127
    %v729 = vunpack.c.l.b16 %v128
    %v730 = vunpack.c.h.b16 %v128
    %v731 = vunpack.c.l.b16 %v129
    %v732 = vunpack.c.h.b16 %v129
    %v733 = vunpack.c.l.b16 %v130
    %v734 = vunpack.c.h.b16 %v130
    %v735 = vunpack.c.l.b16 %v131
    %v736 = vunpack.c.h.b16 %v131
    %v737 = vunpack.c.l.b16 %v132
    %v738 = vunpack.c.h.b16 %v132
    %v739 = vunpack.c.l.b16 %v133
    %v740 = vunpack.c.h.b16 %v133
    %v741 = vunpack.c.l.b16 %v134
    %v742 = vunpack.c.h.b16 %v134
    %v743 = vunpack.c.l.b16 %v135
    %v744 = vunpack.c.h.b16 %v135
    %v745 = vunpack.c.l.b16 %v136
    %v746 = vunpack.c.h.b16 %v136
    %v747 = vunpack.c.l.b16 %v137
    %v748 = vunpack.c.h.b16 %v137
    %v749 = vunpack.c.l.b16 %v138
    %v750 = vunpack.c.h.b16 %v138
    %v751 = vunpack.c.l.b16 %v139
    %v752 = vunpack.c.h.b16 %v139
    %v753 = vunpack.c.l.b16 %v140
    %v754 = vunpack.c.h.b16 %v140
    %v755 = vunpack.c.l.b16 %v141
    %v756 = vunpack.c.h.b16 %v141
    %v757 = vunpack.c.l.b16 %v142
    %v758 = vunpack.c.h.b16 %v142
    %v759 = vunpack.c.l.b16 %v143
    %v760 = vunpack.c.h.b16 %v143
    %v761 = vunpack.c.l.b16 %v144
    %v762 = vunpack.c.h.b16 %v144
    %v763 = vunpack.c.l.b16 %v145
    %v764 = vunpack.c.h.b16 %v145
    %v765 = vunpack.c.l.b16 %v146
    %v766 = vunpack.c.h.b16 %v146
    %v767 = vunpack.c.l.b16 %v147
    %v768 = vunpack.c.h.b16 %v147
    %v769 = vunpack.c.l.b16 %v148
    %v770 = vunpack.c.h.b16 %v148
    %v771 = vunpack.c.l.b16 %v149
    %v772 = vunpack.c.h.b16 %v149
    %v773 = vunpack.c.l.b16 %v150
    %v774 = vunpack.c.h.b16 %v150
    %v775 = vunpack.c.l.b16 %v151
    %v776 = vunpack.c.h.b16 %v151
    %v777 = vunpack.c.l.b16 %v152
    %v778 = vunpack.c.h.b16 %v152
    %v779 = vunpack.c.l.b16 %v153
    %v780 = vunpack.c.h.b16 %v153
    %v781 = vunpack.c.l.b16 %v154
    %v782 = vunpack.c.h.b16 %v154
    %v783 = vunpack.c.l.b16 %v155
    %v784 = vunpack.c.h.b16 %v155
    %v785 = vunpack.c.l.b16 %v156
    %v786 = vunpack.c.h.b16 %v156
    %v787 = vunpack.c.l.b16 %v157
    %v788 = vunpack.c.h.b16 %v157
    %v789 = vunpack.c.l.b16 %v158
    %v790 = vunpack.c.h.b16 %v158
    %v791 = vunpack.c.l.b16 %v159
    %v792 = vunpack.c.h.b16 %v159
    %v793 = vunpack.c.l.b16 %v160
    %v794 = vunpack.c.h.b16 %v160
    %v795 = vunpack.c.l.b16 %v161
    %v796 = vunpack.c.h.b16 %v161
    %v797 = vunpack.c.l.b16 %v162
    %v798 = vunpack.c.h.b16 %v162
    %v799 = vunpack.c.l.b16 %v163
    %v800 = vunpack.c.h.b16 %v163
    %v801 = vunpack.c.l.b16 %v164
    %v802 = vunpack.c.h.b16 %v164
    %v803 = vunpack.c.l.b16 %v165
    %v804 = vunpack.c.h.b16 %v165
    %v805 = vunpack.c.l.b16 %v166
    %v806 = vunpack.c.h.b16 %v166
    %v807 = vunpack.c.l.b16 %v167
    %v808 = vunpack.c.h.b16 %v167
    %v809 = vunpack.c.l.b16 %v168
    %v810 = vunpack.c.h.b16 %v168
    %v811 = vunpack.c.l.b16 %v169
    %v812 = vunpack.c.h.b16 %v169
    %v813 = vunpack.c.l.b16 %v170
    %v814 = vunpack.c.h.b16 %v170
    %v815 = vunpack.c.l.b16 %v171
    %v816 = vunpack.c.h.b16 %v171
    %v817 = vunpack.c.l.b16 %v172
    %v818 = vunpack.c.h.b16 %v172
    %v819 = vunpack.c.l.b16 %v173
    %v820 = vunpack.c.h.b16 %v173
    %v821 = vunpack.c.l.b16 %v174
    %v822 = vunpack.c.h.b16 %v174
    %v823 = vunpack.c.l.b16 %v175
    %v824 = vunpack.c.h.b16 %v175
    %v825 = vunpack.c.l.b16 %v176
    %v826 = vunpack.c.h.b16 %v176
    %v827 = vunpack.c.l.b16 %v177
    %v828 = vunpack.c.h.b16 %v177
    %v829 = vunpack.c.l.b16 %v178
    %v830 = vunpack.c.h.b16 %v178
    %v831 = vunpack.c.l.b16 %v179
    %v832 = vunpack.c.h.b16 %v179
    %v833 = vunpack.c.l.b16 %v180
    %v834 = vunpack.c.h.b16 %v180
    %v835 = vunpack.c.l.b16 %v181
    %v836 = vunpack.c.h.b16 %v181
    %v837 = vunpack.c.l.b16 %v182
    %v838 = vunpack.c.h.b16 %v182
    %v839 = vunpack.c.l.b16 %v183
    %v840 = vunpack.c.h.b16 %v183
    %v841 = vunpack.c.l.b16 %v184
    %v842 = vunpack.c.h.b16 %v184
    %v843 = vunpack.c.l.b16 %v185
    %v844 = vunpack.c.h.b16 %v185
    %v845 = vunpack.c.l.b16 %v186
    %v846 = vunpack.c.h.b16 %v186
    %v847 = vunpack.c.l.b16 %v187
    %v848 = vunpack.c.h.b16 %v187
    %v849 = vunpack.c.l.b16 %v188
    %v850 = vunpack.c.h.b16 %v188
    %v851 = vunpack.c.l.b16 %v189
    %v852 = vunpack.c.h.b16 %v189
    %v853 = vunpack.c.l.b16 %v190
    %v854 = vunpack.c.h.b16 %v190
    %v855 = vunpack.c.l.b16 %v191
    %v856 = vunpack.c.h.b16 %v191
    %v857 = vunpack.c.l.b16 %v192
    %v858 = vunpack.c.h.b16 %v192
    %v859 = vunpack.c.l.b16 %v193
    %v860 = vunpack.c.h.b16 %v193
    %v861 = vunpack.c.l.b16 %v194
    %v862 = vunpack.c.h.b16 %v194
    %v863 = vunpack.c.l.b16 %v195
    %v864 = vunpack.c.h.b16 %v195
    %v865 = vunpack.c.l.b16 %v196
    %v866 = vunpack.c.h.b16 %v196
    %v867 = vunpack.c.l.b16 %v197
    %v868 = vunpack.c.h.b16 %v197
    %v869 = vunpack.c.l.b16 %v198
    %v870 = vunpack.c.h.b16 %v198
    %v871 = vunpack.c.l.b16 %v199
    %v872 = vunpack.c.h.b16 %v199
    %v873 = vunpack.c.l.b16 %v200
    %v874 = vunpack.c.h.b16 %v200
    %v875 = vunpack.c.l.b16 %v201
    %v876 = vunpack.c.h.b16 %v201
    %v877 = vunpack.c.l.b16 %v202
    %v878 = vunpack.c.h.b16 %v202
    %v879 = vunpack.c.l.b16 %v203
    %v880 = vunpack.c.h.b16 %v203
    %v881 = vunpack.c.l.b16 %v204
    %v882 = vunpack.c.h.b16 %v204
    %v883 = vunpack.c.l.b16 %v205
    %v884 = vunpack.c.h.b16 %v205
    %v885 = vunpack.c.l.b16 %v206
    %v886 = vunpack.c.h.b16 %v206
    %v887 = vunpack.c.l.b16 %v207
    %v888 = vunpack.c.h.b16 %v207
    %v889 = vunpack.c.l.b16 %v208
    %v890 = vunpack.c.h.b16 %v208
    %v891 = vunpack.c.l.b16 %v209
    %v892 = vunpack.c.h.b16 %v209
    %v893 = vunpack.c.l.b16 %v210
    %v894 = vunpack.c.h.b16 %v210
    %v895 = vunpack.c.l.b16 %v211
    %v896 = vunpack.c.h.b16 %v211
    %v897 = vunpack.c.l.b16 %v212
    %v898 = vunpack.c.h.b16 %v212
    %v899 = vunpack.c.l.b16 %v213
    %v900 = vunpack.c.h.b16 %v213
    %v901 = vunpack.c.l.b16 %v214
    %v902 = vunpack.c.h.b16 %v214
    %v903 = vunpack.c.l.b16 %v215
    %v904 = vunpack.c.h.b16 %v215
    %v905 = vunpack.c.l.b16 %v216
    %v906 = vunpack.c.h.b16 %v216
    %v907 = vunpack.c.l.b16 %v217
    %v908 = vunpack.c.h.b16 %v217
    %v909 = vunpack.c.l.b16 %v218
    %v910 = vunpack.c.h.b16 %v218
    %v911 = vunpack.c.l.b16 %v219
    %v912 = vunpack.c.h.b16 %v219
    %v913 = vunpack.c.l.b16 %v220
    %v914 = vunpack.c.h.b16 %v220
    %v915 = vunpack.c.l.b16 %v221
    %v916 = vunpack.c.h.b16 %v221
    %v917 = vunpack.c.l.b16 %v222
    %v918 = vunpack.c.h.b16 %v222
    %v919 = vunpack.c.l.b16 %v223
    %v920 = vunpack.c.h.b16 %v223
    %v921 = vunpack.c.l.b16 %v224
    %v922 = vunpack.c.h.b16 %v224
    %v923 = vunpack.c.l.b16 %v225
    %v924 = vunpack.c.h.b16 %v225
    %v925 = vunpack.c.l.b16 %v226
    %v926 = vunpack.c.h.b16 %v226
    %v927 = vunpack.c.l.b16 %v227
    %v928 = vunpack.c.h.b16 %v227
    %v929 = vunpack.c.l.b16 %v228
    %v930 = vunpack.c.h.b16 %v228
    %v931 = vunpack.c.l.b16 %v229
    %v932 = vunpack.c.h.b16 %v229
    %v933 = vunpack.c.l.b16 %v230
    %v934 = vunpack.c.h.b16 %v230
    %v935 = vunpack.c.l.b16 %v231
    %v936 = vunpack.c.h.b16 %v231
    %v937 = vunpack.c.l.b16 %v232
    %v938 = vunpack.c.h.b16 %v232
    %v939 = vunpack.c.l.b16 %v233
    %v940 = vunpack.c.h.b16 %v233
    %v941 = vunpack.c.l.b16 %v234
    %v942 = vunpack.c.h.b16 %v234
    %v943 = vunpack.c.l.b16 %v235
    %v944 = vunpack.c.h.b16 %v235
    %v945 = vunpack.c.l.b16 %v236
    %v946 = vunpack.c.h.b16 %v236
    %v947 = vunpack.c.l.b16 %v237
    %v948 = vunpack.c.h.b16 %v237
    %v949 = vunpack.c.l.b16 %v238
    %v950 = vunpack.c.h.b16 %v238
    %v951 = vunpack.c.l.b16 %v239
    %v952 = vunpack.c.h.b16 %v239
    %v953 = vunpack.c.l.b16 %v240
    %v954 = vunpack.c.h.b16 %v240
    %v955 = vunpack.c.l.b16 %v241
    %v956 = vunpack.c.h.b16 %v241
    %v957 = vunpack.c.l.b16 %v242
    %v958 = vunpack.c.h.b16 %v242
    %v959 = vunpack.c.l.b16 %v243
    %v960 = vunpack.c.h.b16 %v243
    %v961 = vunpack.c.l.b16 %v244
    %v962 = vunpack.c.h.b16 %v244
    %v963 = vunpack.c.l.b16 %v245
    %v964 = vunpack.c.h.b16 %v245
    %v965 = vunpack.c.l.b16 %v246
    %v966 = vunpack.c.h.b16 %v246
    %v967 = vunpack.c.l.b16 %v247
    %v968 = vunpack.c.h.b16 %v247
    %v969 = vunpack.c.l.b16 %v248
    %v970 = vunpack.c.h.b16 %v248
    %v971 = vunpack.c.l.b16 %v249
    %v972 = vunpack.c.h.b16 %v249
    %v973 = vunpack.c.l.b16 %v250
    %v974 = vunpack.c.h.b16 %v250
    %v975 = vunpack.c.l.b16 %v251
    %v976 = vunpack.c.h.b16 %v251
    %v977 = vunpack.c.l.b16 %v252
    %v978 = vunpack.c.h.b16 %v252
    %v979 = vunpack.c.l.b16 %v253
    %v980 = vunpack.c.h.b16 %v253
    %v981 = vunpack.c.l.b16 %v254
    %v982 = vunpack.c.h.b16 %v254
    %v983 = vunpack.c.l.b16 %v255
    %v984 = vunpack.c.h.b16 %v255
    %v985 = vunpack.c.l.b16 %v256
    %v986 = vunpack.c.h.b16 %v256
    %v987 = vunpack.c.l.b16 %v257
    %v988 = vunpack.c.h.b16 %v257
    %v989 = vunpack.c.l.b16 %v258
    %v990 = vunpack.c.h.b16 %v258
    %v991 = vunpack.c.l.b16 %v259
    %v992 = vunpack.c.h.b16 %v259
    %v993 = vunpack.c.l.b16 %v260
    %v994 = vunpack.c.h.b16 %v260
    %v995 = vunpack.c.l.b16 %v261
    %v996 = vunpack.c.h.b16 %v261
    %v997 = vunpack.c.l.b16 %v262
    %v998 = vunpack.c.h.b16 %v262
    %v999 = vunpack.c.l.b16 %v263
    %v1000 = vunpack.c.h.b16 %v263
    %v1001 = vunpack.c.l.b16 %v264
    %v1002 = vunpack.c.h.b16 %v264
    %v1003 = vunpack.c.l.b16 %v265
    %v1004 = vunpack.c.h.b16 %v265
    %v1005 = vunpack.c.l.b16 %v266
    %v1006 = vunpack.c.h.b16 %v266
    %v1007 = vunpack.c.l.b16 %v267
    %v1008 = vunpack.c.h.b16 %v267
    %v1009 = vunpack.c.l.b16 %v268
    %v1010 = vunpack.c.h.b16 %v268
    %v1011 = vunpack.c.l.b16 %v269
    %v1012 = vunpack.c.h.b16 %v269
    %v1013 = vunpack.c.l.b16 %v270
    %v1014 = vunpack.c.h.b16 %v270
    %v1015 = vunpack.c.l.b16 %v271
    %v1016 = vunpack.c.h.b16 %v271
    %v1017 = vunpack.c.l.b16 %v272
    %v1018 = vunpack.c.h.b16 %v272
    %v1019 = vunpack.c.l.b16 %v273
    %v1020 = vunpack.c.h.b16 %v273
    %v1021 = vunpack.c.l.b16 %v274
    %v1022 = vunpack.c.h.b16 %v274
    %v1023 = vunpack.c.l.b16 %v275
    %v1024 = vunpack.c.h.b16 %v275
    %v1025 = vunpack.c.l.b16 %v276
    %v1026 = vunpack.c.h.b16 %v276
    %v1027 = vunpack.c.l.b16 %v277
    %v1028 = vunpack.c.h.b16 %v277
    %v1029 = vunpack.c.l.b16 %v278
    %v1030 = vunpack.c.h.b16 %v278
    %v1031 = vunpack.c.l.b16 %v279
    %v1032 = vunpack.c.h.b16 %v279
    %v1033 = vunpack.c.l.b16 %v280
    %v1034 = vunpack.c.h.b16 %v280
    %v1035 = vunpack.c.l.b16 %v281
    %v1036 = vunpack.c.h.b16 %v281
    %v1037 = vunpack.c.l.b16 %v282
    %v1038 = vunpack.c.h.b16 %v282
    %v1039 = vunpack.c.l.b16 %v283
    %v1040 = vunpack.c.h.b16 %v283
    %v1041 = vunpack.c.l.b16 %v284
    %v1042 = vunpack.c.h.b16 %v284
    %v1043 = vunpack.c.l.b16 %v285
    %v1044 = vunpack.c.h.b16 %v285
    %v1045 = vunpack.c.l.b16 %v286
    %v1046 = vunpack.c.h.b16 %v286
    %v1047 = vunpack.c.l.b16 %v287
    %v1048 = vunpack.c.h.b16 %v287
    %v1049 = vunpack.c.l.b16 %v288
    %v1050 = vunpack.c.h.b16 %v288
    %v1051 = vunpack.c.l.b16 %v289
    %v1052 = vunpack.c.h.b16 %v289
    %v1053 = vunpack.c.l.b16 %v290
    %v1054 = vunpack.c.h.b16 %v290
    %v1055 = vunpack.c.l.b16 %v291
    %v1056 = vunpack.c.h.b16 %v291
    %v1057 = vunpack.c.l.b16 %v292
    %v1058 = vunpack.c.h.b16 %v292
    %v1059 = vunpack.c.l.b16 %v293
    %v1060 = vunpack.c.h.b16 %v293
    %v1061 = vunpack.c.l.b16 %v294
    %v1062 = vunpack.c.h.b16 %v294
    %v1063 = vunpack.c.l.b16 %v295
    %v1064 = vunpack.c.h.b16 %v295
    %v1065 = vunpack.c.l.b16 %v296
    %v1066 = vunpack.c.h.b16 %v296
    %v1067 = vunpack.c.l.b16 %v297
    %v1068 = vunpack.c.h.b16 %v297
    %v1069 = vunpack.c.l.b16 %v298
    %v1070 = vunpack.c.h.b16 %v298
    %v1071 = vunpack.c.l.b16 %v299
    %v1072 = vunpack.c.h.b16 %v299
    %v1073 = vunpack.c.l.b16 %v300
    %v1074 = vunpack.c.h.b16 %v300
    %v1075 = vunpack.c.l.b16 %v301
    %v1076 = vunpack.c.h.b16 %v301
    %v1077 = vunpack.c.l.b16 %v302
    %v1078 = vunpack.c.h.b16 %v302
    %v1079 = vunpack.c.l.b16 %v303
    %v1080 = vunpack.c.h.b16 %v303
    %v1081 = vunpack.c.l.b16 %v304
    %v1082 = vunpack.c.h.b16 %v304
    %v1083 = vunpack.c.l.b16 %v305
    %v1084 = vunpack.c.h.b16 %v305
    %v1085 = vunpack.c.l.b16 %v306
    %v1086 = vunpack.c.h.b16 %v306
    %v1087 = vunpack.c.l.b16 %v307
    %v1088 = vunpack.c.h.b16 %v307
    %v1089 = vunpack.c.l.b16 %v308
    %v1090 = vunpack.c.h.b16 %v308
    %v1091 = vunpack.c.l.b16 %v309
    %v1092 = vunpack.c.h.b16 %v309
    %v1093 = vunpack.c.l.b16 %v310
    %v1094 = vunpack.c.h.b16 %v310
    %v1095 = vunpack.c.l.b16 %v311
    %v1096 = vunpack.c.h.b16 %v311
    %v1097 = vunpack.c.l.b16 %v312
    %v1098 = vunpack.c.h.b16 %v312
    %v1099 = vunpack.c.l.b16 %v313
    %v1100 = vunpack.c.h.b16 %v313
    %v1101 = vunpack.c.l.b16 %v314
    %v1102 = vunpack.c.h.b16 %v314
    %v1103 = vunpack.c.l.b16 %v315
    %v1104 = vunpack.c.h.b16 %v315
    %v1105 = vunpack.c.l.b16 %v316
    %v1106 = vunpack.c.h.b16 %v316
    %v1107 = vunpack.c.l.b16 %v317
    %v1108 = vunpack.c.h.b16 %v317
    %v1109 = vunpack.c.l.b16 %v318
    %v1110 = vunpack.c.h.b16 %v318
    %v1111 = vunpack.c.l.b16 %v319
    %v1112 = vunpack.c.h.b16 %v319
    %v1113 = vunpack.c.l.b16 %v320
    %v1114 = vunpack.c.h.b16 %v320
    %v1115 = vunpack.c.l.b16 %v321
    %v1116 = vunpack.c.h.b16 %v321
    %v1117 = vunpack.c.l.b16 %v322
    %v1118 = vunpack.c.h.b16 %v322
    %v1119 = vpack.c.b16 %v611, %v607
    %v1120 = vpack.c.b16 %v612, %v608
    %v1121 = vpack.c.b16 %v613, %v609
    %v1122 = vpack.c.b16 %v614, %v610
    %v1123 = vpack.c.b16 %v619, %v615
    %v1124 = vpack.c.b16 %v620, %v616
    %v1125 = vpack.c.b16 %v621, %v617
    %v1126 = vpack.c.b16 %v622, %v618
    %v1127 = vpack.c.b16 %v627, %v623
    %v1128 = vpack.c.b16 %v628, %v624
    %v1129 = vpack.c.b16 %v629, %v625
    %v1130 = vpack.c.b16 %v630, %v626
    %v1131 = vpack.c.b16 %v635, %v631
    %v1132 = vpack.c.b16 %v636, %v632
    %v1133 = vpack.c.b16 %v637, %v633
    %v1134 = vpack.c.b16 %v638, %v634
    %v1135 = vpack.c.b16 %v643, %v639
    %v1136 = vpack.c.b16 %v644, %v640
    %v1137 = vpack.c.b16 %v645, %v641
    %v1138 = vpack.c.b16 %v646, %v642
    %v1139 = vpack.c.b16 %v651, %v647
    %v1140 = vpack.c.b16 %v652, %v648
    %v1141 = vpack.c.b16 %v653, %v649
    %v1142 = vpack.c.b16 %v654, %v650
    %v1143 = vpack.c.b16 %v659, %v655
    %v1144 = vpack.c.b16 %v660, %v656
    %v1145 = vpack.c.b16 %v661, %v657
    %v1146 = vpack.c.b16 %v662, %v658
    %v1147 = vpack.c.b16 %v667, %v663
    %v1148 = vpack.c.b16 %v668, %v664
    %v1149 = vpack.c.b16 %v669, %v665
    %v1150 = vpack.c.b16 %v670, %v666
    %v1151 = vpack.c.b16 %v675, %v671
    %v1152 = vpack.c.b16 %v676, %v672
    %v1153 = vpack.c.b16 %v677, %v673
    %v1154 = vpack.c.b16 %v678, %v674
    %v1155 = vpack.c.b16 %v683, %v679
    %v1156 = vpack.c.b16 %v684, %v680
    %v1157 = vpack.c.b16 %v685, %v681
    %v1158 = vpack.c.b16 %v686, %v682
    %v1159 = vpack.c.b16 %v691, %v687
    %v1160 = vpack.c.b16 %v692, %v688
    %v1161 = vpack.c.b16 %v693, %v689
    %v1162 = vpack.c.b16 %v694, %v690
    %v1163 = vpack.c.b16 %v699, %v695
    %v1164 = vpack.c.b16 %v700, %v696
    %v1165 = vpack.c.b16 %v701, %v697
    %v1166 = vpack.c.b16 %v702, %v698
    %v1167 = vpack.c.b16 %v707, %v703
    %v1168 = vpack.c.b16 %v708, %v704
    %v1169 = vpack.c.b16 %v709, %v705
    %v1170 = vpack.c.b16 %v710, %v706
    %v1171 = vpack.c.b16 %v715, %v711
    %v1172 = vpack.c.b16 %v716, %v712
    %v1173 = vpack.c.b16 %v717, %v713
    %v1174 = vpack.c.b16 %v718, %v714
    %v1175 = vpack.c.b16 %v723, %v719
    %v1176 = vpack.c.b16 %v724, %v720
    %v1177 = vpack.c.b16 %v725, %v721
    %v1178 = vpack.c.b16 %v726, %v722
    %v1179 = vpack.c.b16 %v731, %v727
    %v1180 = vpack.c.b16 %v732, %v728
    %v1181 = vpack.c.b16 %v733, %v729
    %v1182 = vpack.c.b16 %v734, %v730
    %v1183 = vpack.c.b16 %v739, %v735
    %v1184 = vpack.c.b16 %v740, %v736
    %v1185 = vpack.c.b16 %v741, %v737
    %v1186 = vpack.c.b16 %v742, %v738
    %v1187 = vpack.c.b16 %v747, %v743
    %v1188 = vpack.c.b16 %v748, %v744
    %v1189 = vpack.c.b16 %v749, %v745
    %v1190 = vpack.c.b16 %v750, %v746
    %v1191 = vpack.c.b16 %v755, %v751
    %v1192 = vpack.c.b16 %v756, %v752
    %v1193 = vpack.c.b16 %v757, %v753
    %v1194 = vpack.c.b16 %v758, %v754
    %v1195 = vpack.c.b16 %v763, %v759
    %v1196 = vpack.c.b16 %v764, %v760
    %v1197 = vpack.c.b16 %v765, %v761
    %v1198 = vpack.c.b16 %v766, %v762
    %v1199 = vpack.c.b16 %v771, %v767
    %v1200 = vpack.c.b16 %v772, %v768
    %v1201 = vpack.c.b16 %v773, %v769
    %v1202 = vpack.c.b16 %v774, %v770
    %v1203 = vpack.c.b16 %v779, %v775
    %v1204 = vpack.c.b16 %v780, %v776
    %v1205 = vpack.c.b16 %v781, %v777
    %v1206 = vpack.c.b16 %v782, %v778
    %v1207 = vpack.c.b16 %v787, %v783
    %v1208 = vpack.c.b16 %v788, %v784
    %v1209 = vpack.c.b16 %v789, %v785
    %v1210 = vpack.c.b16 %v790, %v786
    %v1211 = vpack.c.b16 %v795, %v791
    %v1212 = vpack.c.b16 %v796, %v792
    %v1213 = vpack.c.b16 %v797, %v793
    %v1214 = vpack.c.b16 %v798, %v794
    %v1215 = vpack.c.b16 %v803, %v799
    %v1216 = vpack.c.b16 %v804, %v800
    %v1217 = vpack.c.b16 %v805, %v801
    %v1218 = vpack.c.b16 %v806, %v802
    %v1219 = vpack.c.b16 %v811, %v807
    %v1220 = vpack.c.b16 %v812, %v808
    %v1221 = vpack.c.b16 %v813, %v809
    %v1222 = vpack.c.b16 %v814, %v810
    %v1223 = vpack.c.b16 %v819, %v815
    %v1224 = vpack.c.b16 %v820, %v816
    %v1225 = vpack.c.b16 %v821, %v817
    %v1226 = vpack.c.b16 %v822, %v818
    %v1227 = vpack.c.b16 %v827, %v823
    %v1228 = vpack.c.b16 %v828, %v824
    %v1229 = vpack.c.b16 %v829, %v825
    %v1230 = vpack.c.b16 %v830, %v826
    %v1231 = vpack.c.b16 %v835, %v831
    %v1232 = vpack.c.b16 %v836, %v832
    %v1233 = vpack.c.b16 %v837, %v833
    %v1234 = vpack.c.b16 %v838, %v834
    %v1235 = vpack.c.b16 %v843, %v839
    %v1236 = vpack.c.b16 %v844, %v840
    %v1237 = vpack.c.b16 %v845, %v841
    %v1238 = vpack.c.b16 %v846, %v842
    %v1239 = vpack.c.b16 %v851, %v847
    %v1240 = vpack.c.b16 %v852, %v848
    %v1241 = vpack.c.b16 %v853, %v849
    %v1242 = vpack.c.b16 %v854, %v850
    %v1243 = vpack.c.b16 %v859, %v855
    %v1244 = vpack.c.b16 %v860, %v856
    %v1245 = vpack.c.b16 %v861, %v857
    %v1246 = vpack.c.b16 %v862, %v858
    %v1247 = vpack.c.b16 %v867, %v863
    %v1248 = vpack.c.b16 %v868, %v864
    %v1249 = vpack.c.b16 %v869, %v865
    %v1250 = vpack.c.b16 %v870, %v866
    %v1251 = vpack.c.b16 %v875, %v871
    %v1252 = vpack.c.b16 %v876, %v872
    %v1253 = vpack.c.b16 %v877, %v873
    %v1254 = vpack.c.b16 %v878, %v874
    %v1255 = vpack.c.b16 %v883, %v879
    %v1256 = vpack.c.b16 %v884, %v880
    %v1257 = vpack.c.b16 %v885, %v881
    %v1258 = vpack.c.b16 %v886, %v882
    %v1259 = vpack.c.b16 %v891, %v887
    %v1260 = vpack.c.b16 %v892, %v888
    %v1261 = vpack.c.b16 %v893, %v889
    %v1262 = vpack.c.b16 %v894, %v890
    %v1263 = vpack.c.b16 %v899, %v895
    %v1264 = vpack.c.b16 %v900, %v896
    %v1265 = vpack.c.b16 %v901, %v897
    %v1266 = vpack.c.b16 %v902, %v898
    %v1267 = vpack.c.b16 %v907, %v903
    %v1268 = vpack.c.b16 %v908, %v904
    %v1269 = vpack.c.b16 %v909, %v905
    %v1270 = vpack.c.b16 %v910, %v906
    %v1271 = vpack.c.b16 %v915, %v911
    %v1272 = vpack.c.b16 %v916, %v912
    %v1273 = vpack.c.b16 %v917, %v913
    %v1274 = vpack.c.b16 %v918, %v914
    %v1275 = vpack.c.b16 %v923, %v919
    %v1276 = vpack.c.b16 %v924, %v920
    %v1277 = vpack.c.b16 %v925, %v921
    %v1278 = vpack.c.b16 %v926, %v922
    %v1279 = vpack.c.b16 %v931, %v927
    %v1280 = vpack.c.b16 %v932, %v928
    %v1281 = vpack.c.b16 %v933, %v929
    %v1282 = vpack.c.b16 %v934, %v930
    %v1283 = vpack.c.b16 %v939, %v935
    %v1284 = vpack.c.b16 %v940, %v936
    %v1285 = vpack.c.b16 %v941, %v937
    %v1286 = vpack.c.b16 %v942, %v938
    %v1287 = vpack.c.b16 %v947, %v943
    %v1288 = vpack.c.b16 %v948, %v944
    %v1289 = vpack.c.b16 %v949, %v945
    %v1290 = vpack.c.b16 %v950, %v946
    %v1291 = vpack.c.b16 %v955, %v951
    %v1292 = vpack.c.b16 %v956, %v952
    %v1293 = vpack.c.b16 %v957, %v953
    %v1294 = vpack.c.b16 %v958, %v954
    %v1295 = vpack.c.b16 %v963, %v959
    %v1296 = vpack.c.b16 %v964, %v960
    %v1297 = vpack.c.b16 %v965, %v961
    %v1298 = vpack.c.b16 %v966, %v962
    %v1299 = vpack.c.b16 %v971, %v967
    %v1300 = vpack.c.b16 %v972, %v968
    %v1301 = vpack.c.b16 %v973, %v969
    %v1302 = vpack.c.b16 %v974, %v970
    %v1303 = vpack.c.b16 %v979, %v975
    %v1304 = vpack.c.b16 %v980, %v976
    %v1305 = vpack.c.b16 %v981, %v977
    %v1306 = vpack.c.b16 %v982, %v978
    %v1307 = vpack.c.b16 %v987, %v983
    %v1308 = vpack.c.b16 %v988, %v984
    %v1309 = vpack.c.b16 %v989, %v985
    %v1310 = vpack.c.b16 %v990, %v986
    %v1311 = vpack.c.b16 %v995, %v991
    %v1312 = vpack.c.b16 %v996, %v992
    %v1313 = vpack.c.b16 %v997, %v993
    %v1314 = vpack.c.b16 %v998, %v994
    %v1315 = vpack.c.b16 %v1003, %v999
    %v1316 = vpack.c.b16 %v1004, %v1000
    %v1317 = vpack.c.b16 %v1005, %v1001
    %v1318 = vpack.c.b16 %v1006, %v1002
    %v1319 = vpack.c.b16 %v1011, %v1007
    %v1320 = vpack.c.b16 %v1012, %v1008
    %v1321 = vpack.c.b16 %v1013, %v1009
    %v1322 = vpack.c.b16 %v1014, %v1010
    %v1323 = vpack.c.b16 %v1019, %v1015
    %v1324 = vpack.c.b16 %v1020, %v1016
    %v1325 = vpack.c.b16 %v1021, %v1017
    %v1326 = vpack.c.b16 %v1022, %v1018
    %v1327 = vpack.c.b16 %v1027, %v1023
    %v1328 = vpack.c.b16 %v1028, %v1024
    %v1329 = vpack.c.b16 %v1029, %v1025
    %v1330 = vpack.c.b16 %v1030, %v1026
    %v1331 = vpack.c.b16 %v1035, %v1031
    %v1332 = vpack.c.b16 %v1036, %v1032
    %v1333 = vpack.c.b16 %v1037, %v1033
    %v1334 = vpack.c.b16 %v1038, %v1034
    %v1335 = vpack.c.b16 %v1043, %v1039
    %v1336 = vpack.c.b16 %v1044, %v1040
    %v1337 = vpack.c.b16 %v1045, %v1041
    %v1338 = vpack.c.b16 %v1046, %v1042
    %v1339 = vpack.c.b16 %v1051, %v1047
    %v1340 = vpack.c.b16 %v1052, %v1048
    %v1341 = vpack.c.b16 %v1053, %v1049
    %v1342 = vpack.c.b16 %v1054, %v1050
    %v1343 = vpack.c.b16 %v1059, %v1055
    %v1344 = vpack.c.b16 %v1060, %v1056
    %v1345 = vpack.c.b16 %v1061, %v1057
    %v1346 = vpack.c.b16 %v1062, %v1058
    %v1347 = vpack.c.b16 %v1067, %v1063
    %v1348 = vpack.c.b16 %v1068, %v1064
    %v1349 = vpack.c.b16 %v1069, %v1065
    %v1350 = vpack.c.b16 %v1070, %v1066
    %v1351 = vpack.c.b16 %v1075, %v1071
    %v1352 = vpack.c.b16 %v1076, %v1072
    %v1353 = vpack.c.b16 %v1077, %v1073
    %v1354 = vpack.c.b16 %v1078, %v1074
    %v1355 = vpack.c.b16 %v1083, %v1079
    %v1356 = vpack.c.b16 %v1084, %v1080
    %v1357 = vpack.c.b16 %v1085, %v1081
    %v1358 = vpack.c.b16 %v1086, %v1082
    %v1359 = vpack.c.b16 %v1091, %v1087
    %v1360 = vpack.c.b16 %v1092, %v1088
    %v1361 = vpack.c.b16 %v1093, %v1089
    %v1362 = vpack.c.b16 %v1094, %v1090
    %v1363 = vpack.c.b16 %v1099, %v1095
    %v1364 = vpack.c.b16 %v1100, %v1096
    %v1365 = vpack.c.b16 %v1101, %v1097
    %v1366 = vpack.c.b16 %v1102, %v1098
    %v1367 = vpack.c.b16 %v1107, %v1103
    %v1368 = vpack.c.b16 %v1108, %v1104
    %v1369 = vpack.c.b16 %v1109, %v1105
    %v1370 = vpack.c.b16 %v1110, %v1106
    %v1371 = vpack.c.b16 %v1115, %v1111
    %v1372 = vpack.c.b16 %v1116, %v1112
    %v1373 = vpack.c.b16 %v1117, %v1113
    %v1374 = vpack.c.b16 %v1118, %v1114
    %1631 = vmatpush.bf16.msra.mxu0 %v1147
    %1632 = vmatpush.bf16.msra.mxu0 %v1143
    %1633 = vmatpush.bf16.msra.mxu0 %v1139
    %1634 = vmatpush.bf16.msra.mxu0 %v1135
    %1635 = vmatpush.bf16.msra.mxu0 %v1131
    %1636 = vmatpush.bf16.msra.mxu0 %v1127
    %1637 = vmatpush.bf16.msra.mxu0 %v1123
    %1638 = vmatpush.bf16.msra.mxu0 %v1119
    %1639 = vmatmul.bf16.gmra.mxu0 %v335
    %v1640 = vpop.f32.mrf.mxu0
    %v1641 = vadd.f32 %v325, %v1640
    %v1642 = vpop.f32.mrf.mxu0
    %1643 = vdwg.mxu0
    %1644 = vmatpush.bf16.msra.mxu0 %v1179
    %1645 = vmatpush.bf16.msra.mxu0 %v1175
    %1646 = vmatpush.bf16.msra.mxu0 %v1171
    %1647 = vmatpush.bf16.msra.mxu0 %v1167
    %1648 = vmatpush.bf16.msra.mxu0 %v1163
    %1649 = vmatpush.bf16.msra.mxu0 %v1159
    %1650 = vmatpush.bf16.msra.mxu0 %v1155
    %1651 = vmatpush.bf16.msra.mxu0 %v1151
    %1652 = vmatmul.bf16.gmra.mxu0 %v336
    %v1653 = vpop.f32.mrf.mxu0
    %v1654 = vadd.f32 %v1641, %v1653
    %v1655 = vpop.f32.mrf.mxu0
    %1656 = vdwg.mxu0
    %1657 = vmatpush.bf16.msra.mxu0 %v1211
    %1658 = vmatpush.bf16.msra.mxu0 %v1207
    %1659 = vmatpush.bf16.msra.mxu0 %v1203
    %1660 = vmatpush.bf16.msra.mxu0 %v1199
    %1661 = vmatpush.bf16.msra.mxu0 %v1195
    %1662 = vmatpush.bf16.msra.mxu0 %v1191
    %1663 = vmatpush.bf16.msra.mxu0 %v1187
    %1664 = vmatpush.bf16.msra.mxu0 %v1183
    %1665 = vmatmul.bf16.gmra.mxu0 %v337
    %v1666 = vpop.f32.mrf.mxu0
    %v1667 = vadd.f32 %v1654, %v1666
    %v1668 = vpop.f32.mrf.mxu0
    %1669 = vdwg.mxu0
    %1670 = vmatpush.bf16.msra.mxu0 %v1243
    %1671 = vmatpush.bf16.msra.mxu0 %v1239
    %1672 = vmatpush.bf16.msra.mxu0 %v1235
    %1673 = vmatpush.bf16.msra.mxu0 %v1231
    %1674 = vmatpush.bf16.msra.mxu0 %v1227
    %1675 = vmatpush.bf16.msra.mxu0 %v1223
    %1676 = vmatpush.bf16.msra.mxu0 %v1219
    %1677 = vmatpush.bf16.msra.mxu0 %v1215
    %1678 = vmatmul.bf16.gmra.mxu0 %v338
    %v1679 = vpop.f32.mrf.mxu0
    %v1680 = vadd.f32 %v1667, %v1679
    %v1681 = vpop.f32.mrf.mxu0
    %1682 = vdwg.mxu0
    %1683 = vmatpush.bf16.msra.mxu0 %v1275
    %1684 = vmatpush.bf16.msra.mxu0 %v1271
    %1685 = vmatpush.bf16.msra.mxu0 %v1267
    %1686 = vmatpush.bf16.msra.mxu0 %v1263
    %1687 = vmatpush.bf16.msra.mxu0 %v1259
    %1688 = vmatpush.bf16.msra.mxu0 %v1255
    %1689 = vmatpush.bf16.msra.mxu0 %v1251
    %1690 = vmatpush.bf16.msra.mxu0 %v1247
    %1691 = vmatmul.bf16.gmra.mxu0 %v339
    %v1692 = vpop.f32.mrf.mxu0
    %v1693 = vadd.f32 %v1680, %v1692
    %v1694 = vpop.f32.mrf.mxu0
    %1695 = vdwg.mxu0
    %1696 = vmatpush.bf16.msra.mxu0 %v1307
    %1697 = vmatpush.bf16.msra.mxu0 %v1303
    %1698 = vmatpush.bf16.msra.mxu0 %v1299
    %1699 = vmatpush.bf16.msra.mxu0 %v1295
    %1700 = vmatpush.bf16.msra.mxu0 %v1291
    %1701 = vmatpush.bf16.msra.mxu0 %v1287
    %1702 = vmatpush.bf16.msra.mxu0 %v1283
    %1703 = vmatpush.bf16.msra.mxu0 %v1279
    %1704 = vmatmul.bf16.gmra.mxu0 %v340
    %v1705 = vpop.f32.mrf.mxu0
    %v1706 = vadd.f32 %v1693, %v1705
    %v1707 = vpop.f32.mrf.mxu0
    %1708 = vdwg.mxu0
    %1709 = vmatpush.bf16.msra.mxu0 %v1339
    %1710 = vmatpush.bf16.msra.mxu0 %v1335
    %1711 = vmatpush.bf16.msra.mxu0 %v1331
    %1712 = vmatpush.bf16.msra.mxu0 %v1327
    %1713 = vmatpush.bf16.msra.mxu0 %v1323
    %1714 = vmatpush.bf16.msra.mxu0 %v1319
    %1715 = vmatpush.bf16.msra.mxu0 %v1315
    %1716 = vmatpush.bf16.msra.mxu0 %v1311
    %1717 = vmatmul.bf16.gmra.mxu0 %v341
    %v1718 = vpop.f32.mrf.mxu0
    %v1719 = vadd.f32 %v1706, %v1718
    %v1720 = vpop.f32.mrf.mxu0
    %1721 = vdwg.mxu0
    %1722 = vmatpush.bf16.msra.mxu0 %v1371
    %1723 = vmatpush.bf16.msra.mxu0 %v1367
    %1724 = vmatpush.bf16.msra.mxu0 %v1363
    %1725 = vmatpush.bf16.msra.mxu0 %v1359
    %1726 = vmatpush.bf16.msra.mxu0 %v1355
    %1727 = vmatpush.bf16.msra.mxu0 %v1351
    %1728 = vmatpush.bf16.msra.mxu0 %v1347
    %1729 = vmatpush.bf16.msra.mxu0 %v1343
    %1730 = vmatmul.bf16.gmra.mxu0 %v342
    %v1731 = vpop.f32.mrf.mxu0
    %v1732 = vadd.f32 %v1719, %v1731
    %v1733 = vpop.f32.mrf.mxu0
    %1734 = vdwg.mxu0
    %1735 = vmatpush.bf16.msra.mxu0 %v1148
    %1736 = vmatpush.bf16.msra.mxu0 %v1144
    %1737 = vmatpush.bf16.msra.mxu0 %v1140
    %1738 = vmatpush.bf16.msra.mxu0 %v1136
    %1739 = vmatpush.bf16.msra.mxu0 %v1132
    %1740 = vmatpush.bf16.msra.mxu0 %v1128
    %1741 = vmatpush.bf16.msra.mxu0 %v1124
    %1742 = vmatpush.bf16.msra.mxu0 %v1120
    %1743 = vmatmul.bf16.gmra.mxu0 %v335
    %v1744 = vpop.f32.mrf.mxu0
    %v1745 = vadd.f32 %v326, %v1744
    %v1746 = vpop.f32.mrf.mxu0
    %1747 = vdwg.mxu0
    %1748 = vmatpush.bf16.msra.mxu0 %v1180
    %1749 = vmatpush.bf16.msra.mxu0 %v1176
    %1750 = vmatpush.bf16.msra.mxu0 %v1172
    %1751 = vmatpush.bf16.msra.mxu0 %v1168
    %1752 = vmatpush.bf16.msra.mxu0 %v1164
    %1753 = vmatpush.bf16.msra.mxu0 %v1160
    %1754 = vmatpush.bf16.msra.mxu0 %v1156
    %1755 = vmatpush.bf16.msra.mxu0 %v1152
    %1756 = vmatmul.bf16.gmra.mxu0 %v336
    %v1757 = vpop.f32.mrf.mxu0
    %v1758 = vadd.f32 %v1745, %v1757
    %v1759 = vpop.f32.mrf.mxu0
    %1760 = vdwg.mxu0
    %1761 = vmatpush.bf16.msra.mxu0 %v1212
    %1762 = vmatpush.bf16.msra.mxu0 %v1208
    %1763 = vmatpush.bf16.msra.mxu0 %v1204
    %1764 = vmatpush.bf16.msra.mxu0 %v1200
    %1765 = vmatpush.bf16.msra.mxu0 %v1196
    %1766 = vmatpush.bf16.msra.mxu0 %v1192
    %1767 = vmatpush.bf16.msra.mxu0 %v1188
    %1768 = vmatpush.bf16.msra.mxu0 %v1184
    %1769 = vmatmul.bf16.gmra.mxu0 %v337
    %v1770 = vpop.f32.mrf.mxu0
    %v1771 = vadd.f32 %v1758, %v1770
    %v1772 = vpop.f32.mrf.mxu0
    %1773 = vdwg.mxu0
    %1774 = vmatpush.bf16.msra.mxu0 %v1244
    %1775 = vmatpush.bf16.msra.mxu0 %v1240
    %1776 = vmatpush.bf16.msra.mxu0 %v1236
    %1777 = vmatpush.bf16.msra.mxu0 %v1232
    %1778 = vmatpush.bf16.msra.mxu0 %v1228
    %1779 = vmatpush.bf16.msra.mxu0 %v1224
    %1780 = vmatpush.bf16.msra.mxu0 %v1220
    %1781 = vmatpush.bf16.msra.mxu0 %v1216
    %1782 = vmatmul.bf16.gmra.mxu0 %v338
    %v1783 = vpop.f32.mrf.mxu0
    %v1784 = vadd.f32 %v1771, %v1783
    %v1785 = vpop.f32.mrf.mxu0
    %1786 = vdwg.mxu0
    %1787 = vmatpush.bf16.msra.mxu0 %v1276
    %1788 = vmatpush.bf16.msra.mxu0 %v1272
    %1789 = vmatpush.bf16.msra.mxu0 %v1268
    %1790 = vmatpush.bf16.msra.mxu0 %v1264
    %1791 = vmatpush.bf16.msra.mxu0 %v1260
    %1792 = vmatpush.bf16.msra.mxu0 %v1256
    %1793 = vmatpush.bf16.msra.mxu0 %v1252
    %1794 = vmatpush.bf16.msra.mxu0 %v1248
    %1795 = vmatmul.bf16.gmra.mxu0 %v339
    %v1796 = vpop.f32.mrf.mxu0
    %v1797 = vadd.f32 %v1784, %v1796
    %v1798 = vpop.f32.mrf.mxu0
    %1799 = vdwg.mxu0
    %1800 = vmatpush.bf16.msra.mxu0 %v1308
    %1801 = vmatpush.bf16.msra.mxu0 %v1304
    %1802 = vmatpush.bf16.msra.mxu0 %v1300
    %1803 = vmatpush.bf16.msra.mxu0 %v1296
    %1804 = vmatpush.bf16.msra.mxu0 %v1292
    %1805 = vmatpush.bf16.msra.mxu0 %v1288
    %1806 = vmatpush.bf16.msra.mxu0 %v1284
    %1807 = vmatpush.bf16.msra.mxu0 %v1280
    %1808 = vmatmul.bf16.gmra.mxu0 %v340
    %v1809 = vpop.f32.mrf.mxu0
    %v1810 = vadd.f32 %v1797, %v1809
    %v1811 = vpop.f32.mrf.mxu0
    %1812 = vdwg.mxu0
    %1813 = vmatpush.bf16.msra.mxu0 %v1340
    %1814 = vmatpush.bf16.msra.mxu0 %v1336
    %1815 = vmatpush.bf16.msra.mxu0 %v1332
    %1816 = vmatpush.bf16.msra.mxu0 %v1328
    %1817 = vmatpush.bf16.msra.mxu0 %v1324
    %1818 = vmatpush.bf16.msra.mxu0 %v1320
    %1819 = vmatpush.bf16.msra.mxu0 %v1316
    %1820 = vmatpush.bf16.msra.mxu0 %v1312
    %1821 = vmatmul.bf16.gmra.mxu0 %v341
    %v1822 = vpop.f32.mrf.mxu0
    %v1823 = vadd.f32 %v1810, %v1822
    %v1824 = vpop.f32.mrf.mxu0
    %1825 = vdwg.mxu0
    %1826 = vmatpush.bf16.msra.mxu0 %v1372
    %1827 = vmatpush.bf16.msra.mxu0 %v1368
    %1828 = vmatpush.bf16.msra.mxu0 %v1364
    %1829 = vmatpush.bf16.msra.mxu0 %v1360
    %1830 = vmatpush.bf16.msra.mxu0 %v1356
    %1831 = vmatpush.bf16.msra.mxu0 %v1352
    %1832 = vmatpush.bf16.msra.mxu0 %v1348
    %1833 = vmatpush.bf16.msra.mxu0 %v1344
    %1834 = vmatmul.bf16.gmra.mxu0 %v342
    %v1835 = vpop.f32.mrf.mxu0
    %v1836 = vadd.f32 %v1823, %v1835
    %v1837 = vpop.f32.mrf.mxu0
    %1838 = vdwg.mxu0
    %1839 = vmatpush.bf16.msra.mxu0 %v1149
    %1840 = vmatpush.bf16.msra.mxu0 %v1145
    %1841 = vmatpush.bf16.msra.mxu0 %v1141
    %1842 = vmatpush.bf16.msra.mxu0 %v1137
    %1843 = vmatpush.bf16.msra.mxu0 %v1133
    %1844 = vmatpush.bf16.msra.mxu0 %v1129
    %1845 = vmatpush.bf16.msra.mxu0 %v1125
    %1846 = vmatpush.bf16.msra.mxu0 %v1121
    %1847 = vmatmul.bf16.gmra.mxu0 %v335
    %v1848 = vpop.f32.mrf.mxu0
    %v1849 = vadd.f32 %v327, %v1848
    %v1850 = vpop.f32.mrf.mxu0
    %1851 = vdwg.mxu0
    %1852 = vmatpush.bf16.msra.mxu0 %v1181
    %1853 = vmatpush.bf16.msra.mxu0 %v1177
    %1854 = vmatpush.bf16.msra.mxu0 %v1173
    %1855 = vmatpush.bf16.msra.mxu0 %v1169
    %1856 = vmatpush.bf16.msra.mxu0 %v1165
    %1857 = vmatpush.bf16.msra.mxu0 %v1161
    %1858 = vmatpush.bf16.msra.mxu0 %v1157
    %1859 = vmatpush.bf16.msra.mxu0 %v1153
    %1860 = vmatmul.bf16.gmra.mxu0 %v336
    %v1861 = vpop.f32.mrf.mxu0
    %v1862 = vadd.f32 %v1849, %v1861
    %v1863 = vpop.f32.mrf.mxu0
    %1864 = vdwg.mxu0
    %1865 = vmatpush.bf16.msra.mxu0 %v1213
    %1866 = vmatpush.bf16.msra.mxu0 %v1209
    %1867 = vmatpush.bf16.msra.mxu0 %v1205
    %1868 = vmatpush.bf16.msra.mxu0 %v1201
    %1869 = vmatpush.bf16.msra.mxu0 %v1197
    %1870 = vmatpush.bf16.msra.mxu0 %v1193
    %1871 = vmatpush.bf16.msra.mxu0 %v1189
    %1872 = vmatpush.bf16.msra.mxu0 %v1185
    %1873 = vmatmul.bf16.gmra.mxu0 %v337
    %v1874 = vpop.f32.mrf.mxu0
    %v1875 = vadd.f32 %v1862, %v1874
    %v1876 = vpop.f32.mrf.mxu0
    %1877 = vdwg.mxu0
    %1878 = vmatpush.bf16.msra.mxu0 %v1245
    %1879 = vmatpush.bf16.msra.mxu0 %v1241
    %1880 = vmatpush.bf16.msra.mxu0 %v1237
    %1881 = vmatpush.bf16.msra.mxu0 %v1233
    %1882 = vmatpush.bf16.msra.mxu0 %v1229
    %1883 = vmatpush.bf16.msra.mxu0 %v1225
    %1884 = vmatpush.bf16.msra.mxu0 %v1221
    %1885 = vmatpush.bf16.msra.mxu0 %v1217
    %1886 = vmatmul.bf16.gmra.mxu0 %v338
    %v1887 = vpop.f32.mrf.mxu0
    %v1888 = vadd.f32 %v1875, %v1887
    %v1889 = vpop.f32.mrf.mxu0
    %1890 = vdwg.mxu0
    %1891 = vmatpush.bf16.msra.mxu0 %v1277
    %1892 = vmatpush.bf16.msra.mxu0 %v1273
    %1893 = vmatpush.bf16.msra.mxu0 %v1269
    %1894 = vmatpush.bf16.msra.mxu0 %v1265
    %1895 = vmatpush.bf16.msra.mxu0 %v1261
    %1896 = vmatpush.bf16.msra.mxu0 %v1257
    %1897 = vmatpush.bf16.msra.mxu0 %v1253
    %1898 = vmatpush.bf16.msra.mxu0 %v1249
    %1899 = vmatmul.bf16.gmra.mxu0 %v339
    %v1900 = vpop.f32.mrf.mxu0
    %v1901 = vadd.f32 %v1888, %v1900
    %v1902 = vpop.f32.mrf.mxu0
    %1903 = vdwg.mxu0
    %1904 = vmatpush.bf16.msra.mxu0 %v1309
    %1905 = vmatpush.bf16.msra.mxu0 %v1305
    %1906 = vmatpush.bf16.msra.mxu0 %v1301
    %1907 = vmatpush.bf16.msra.mxu0 %v1297
    %1908 = vmatpush.bf16.msra.mxu0 %v1293
    %1909 = vmatpush.bf16.msra.mxu0 %v1289
    %1910 = vmatpush.bf16.msra.mxu0 %v1285
    %1911 = vmatpush.bf16.msra.mxu0 %v1281
    %1912 = vmatmul.bf16.gmra.mxu0 %v340
    %v1913 = vpop.f32.mrf.mxu0
    %v1914 = vadd.f32 %v1901, %v1913
    %v1915 = vpop.f32.mrf.mxu0
    %1916 = vdwg.mxu0
    %1917 = vmatpush.bf16.msra.mxu0 %v1341
    %1918 = vmatpush.bf16.msra.mxu0 %v1337
    %1919 = vmatpush.bf16.msra.mxu0 %v1333
    %1920 = vmatpush.bf16.msra.mxu0 %v1329
    %1921 = vmatpush.bf16.msra.mxu0 %v1325
    %1922 = vmatpush.bf16.msra.mxu0 %v1321
    %1923 = vmatpush.bf16.msra.mxu0 %v1317
    %1924 = vmatpush.bf16.msra.mxu0 %v1313
    %1925 = vmatmul.bf16.gmra.mxu0 %v341
    %v1926 = vpop.f32.mrf.mxu0
    %v1927 = vadd.f32 %v1914, %v1926
    %v1928 = vpop.f32.mrf.mxu0
    %1929 = vdwg.mxu0
    %1930 = vmatpush.bf16.msra.mxu0 %v1373
    %1931 = vmatpush.bf16.msra.mxu0 %v1369
    %1932 = vmatpush.bf16.msra.mxu0 %v1365
    %1933 = vmatpush.bf16.msra.mxu0 %v1361
    %1934 = vmatpush.bf16.msra.mxu0 %v1357
    %1935 = vmatpush.bf16.msra.mxu0 %v1353
    %1936 = vmatpush.bf16.msra.mxu0 %v1349
    %1937 = vmatpush.bf16.msra.mxu0 %v1345
    %1938 = vmatmul.bf16.gmra.mxu0 %v342
    %v1939 = vpop.f32.mrf.mxu0
    %v1940 = vadd.f32 %v1927, %v1939
    %v1941 = vpop.f32.mrf.mxu0
    %1942 = vdwg.mxu0
    %1943 = vmatpush.bf16.msra.mxu0 %v1150
    %1944 = vmatpush.bf16.msra.mxu0 %v1146
    %1945 = vmatpush.bf16.msra.mxu0 %v1142
    %1946 = vmatpush.bf16.msra.mxu0 %v1138
    %1947 = vmatpush.bf16.msra.mxu0 %v1134
    %1948 = vmatpush.bf16.msra.mxu0 %v1130
    %1949 = vmatpush.bf16.msra.mxu0 %v1126
    %1950 = vmatpush.bf16.msra.mxu0 %v1122
    %1951 = vmatmul.bf16.gmra.mxu0 %v335
    %v1952 = vpop.f32.mrf.mxu0
    %v1953 = vadd.f32 %v328, %v1952
    %v1954 = vpop.f32.mrf.mxu0
    %1955 = vdwg.mxu0
    %1956 = vmatpush.bf16.msra.mxu0 %v1182
    %1957 = vmatpush.bf16.msra.mxu0 %v1178
    %1958 = vmatpush.bf16.msra.mxu0 %v1174
    %1959 = vmatpush.bf16.msra.mxu0 %v1170
    %1960 = vmatpush.bf16.msra.mxu0 %v1166
    %1961 = vmatpush.bf16.msra.mxu0 %v1162
    %1962 = vmatpush.bf16.msra.mxu0 %v1158
    %1963 = vmatpush.bf16.msra.mxu0 %v1154
    %1964 = vmatmul.bf16.gmra.mxu0 %v336
    %v1965 = vpop.f32.mrf.mxu0
    %v1966 = vadd.f32 %v1953, %v1965
    %v1967 = vpop.f32.mrf.mxu0
    %1968 = vdwg.mxu0
    %1969 = vmatpush.bf16.msra.mxu0 %v1214
    %1970 = vmatpush.bf16.msra.mxu0 %v1210
    %1971 = vmatpush.bf16.msra.mxu0 %v1206
    %1972 = vmatpush.bf16.msra.mxu0 %v1202
    %1973 = vmatpush.bf16.msra.mxu0 %v1198
    %1974 = vmatpush.bf16.msra.mxu0 %v1194
    %1975 = vmatpush.bf16.msra.mxu0 %v1190
    %1976 = vmatpush.bf16.msra.mxu0 %v1186
    %1977 = vmatmul.bf16.gmra.mxu0 %v337
    %v1978 = vpop.f32.mrf.mxu0
    %v1979 = vadd.f32 %v1966, %v1978
    %v1980 = vpop.f32.mrf.mxu0
    %1981 = vdwg.mxu0
    %1982 = vmatpush.bf16.msra.mxu0 %v1246
    %1983 = vmatpush.bf16.msra.mxu0 %v1242
    %1984 = vmatpush.bf16.msra.mxu0 %v1238
    %1985 = vmatpush.bf16.msra.mxu0 %v1234
    %1986 = vmatpush.bf16.msra.mxu0 %v1230
    %1987 = vmatpush.bf16.msra.mxu0 %v1226
    %1988 = vmatpush.bf16.msra.mxu0 %v1222
    %1989 = vmatpush.bf16.msra.mxu0 %v1218
    %1990 = vmatmul.bf16.gmra.mxu0 %v338
    %v1991 = vpop.f32.mrf.mxu0
    %v1992 = vadd.f32 %v1979, %v1991
    %v1993 = vpop.f32.mrf.mxu0
    %1994 = vdwg.mxu0
    %1995 = vmatpush.bf16.msra.mxu0 %v1278
    %1996 = vmatpush.bf16.msra.mxu0 %v1274
    %1997 = vmatpush.bf16.msra.mxu0 %v1270
    %1998 = vmatpush.bf16.msra.mxu0 %v1266
    %1999 = vmatpush.bf16.msra.mxu0 %v1262
    %2000 = vmatpush.bf16.msra.mxu0 %v1258
    %2001 = vmatpush.bf16.msra.mxu0 %v1254
    %2002 = vmatpush.bf16.msra.mxu0 %v1250
    %2003 = vmatmul.bf16.gmra.mxu0 %v339
    %v2004 = vpop.f32.mrf.mxu0
    %v2005 = vadd.f32 %v1992, %v2004
    %v2006 = vpop.f32.mrf.mxu0
    %2007 = vdwg.mxu0
    %2008 = vmatpush.bf16.msra.mxu0 %v1310
    %2009 = vmatpush.bf16.msra.mxu0 %v1306
    %2010 = vmatpush.bf16.msra.mxu0 %v1302
    %2011 = vmatpush.bf16.msra.mxu0 %v1298
    %2012 = vmatpush.bf16.msra.mxu0 %v1294
    %2013 = vmatpush.bf16.msra.mxu0 %v1290
    %2014 = vmatpush.bf16.msra.mxu0 %v1286
    %2015 = vmatpush.bf16.msra.mxu0 %v1282
    %2016 = vmatmul.bf16.gmra.mxu0 %v340
    %v2017 = vpop.f32.mrf.mxu0
    %v2018 = vadd.f32 %v2005, %v2017
    %v2019 = vpop.f32.mrf.mxu0
    %2020 = vdwg.mxu0
    %2021 = vmatpush.bf16.msra.mxu0 %v1342
    %2022 = vmatpush.bf16.msra.mxu0 %v1338
    %2023 = vmatpush.bf16.msra.mxu0 %v1334
    %2024 = vmatpush.bf16.msra.mxu0 %v1330
    %2025 = vmatpush.bf16.msra.mxu0 %v1326
    %2026 = vmatpush.bf16.msra.mxu0 %v1322
    %2027 = vmatpush.bf16.msra.mxu0 %v1318
    %2028 = vmatpush.bf16.msra.mxu0 %v1314
    %2029 = vmatmul.bf16.gmra.mxu0 %v341
    %v2030 = vpop.f32.mrf.mxu0
    %v2031 = vadd.f32 %v2018, %v2030
    %v2032 = vpop.f32.mrf.mxu0
    %2033 = vdwg.mxu0
    %2034 = vmatpush.bf16.msra.mxu0 %v1374
    %2035 = vmatpush.bf16.msra.mxu0 %v1370
    %2036 = vmatpush.bf16.msra.mxu0 %v1366
    %2037 = vmatpush.bf16.msra.mxu0 %v1362
    %2038 = vmatpush.bf16.msra.mxu0 %v1358
    %2039 = vmatpush.bf16.msra.mxu0 %v1354
    %2040 = vmatpush.bf16.msra.mxu0 %v1350
    %2041 = vmatpush.bf16.msra.mxu0 %v1346
    %2042 = vmatmul.bf16.gmra.mxu0 %v342
    %v2043 = vpop.f32.mrf.mxu0
    %v2044 = vadd.f32 %v2031, %v2043
    %v2045 = vpop.f32.mrf.mxu0
    %2046 = vdwg.mxu0
    %v2047 = vmax.f32 %v1732, 0.0
    %v2048 = vmax.f32 %v1836, 0.0
    %v2049 = vmax.f32 %v1940, 0.0
    %v2050 = vmax.f32 %v2044, 0.0
    %v2051 = vpack.c.bf16 %v2047, %v2047
    %v2052 = vpack.c.bf16 %v2048, %v2048
    %v2053 = vpack.c.bf16 %v2049, %v2049
    %v2054 = vpack.c.bf16 %v2050, %v2050
    %v2055 = vld [vmem:[#allocation5] sm:$0xff]
    %v2056 = vld [vmem:[#allocation5 + $0x8] sm:$0xff]
    %v2057 = vld [vmem:[#allocation5 + $0x10] sm:$0xff]
    %v2058 = vld [vmem:[#allocation5 + $0x18] sm:$0xff]
    %v2059 = vld [vmem:[#allocation5 + $0x20] sm:$0xff]
    %v2060 = vld [vmem:[#allocation5 + $0x28] sm:$0xff]
    %v2061 = vld [vmem:[#allocation5 + $0x30] sm:$0xff]
    %v2062 = vld [vmem:[#allocation5 + $0x38] sm:$0xff]
    %v2063 = vld [vmem:[#allocation5 + $0x40] sm:$0xff]
    %v2064 = vld [vmem:[#allocation5 + $0x48] sm:$0xff]
    %v2065 = vld [vmem:[#allocation5 + $0x50] sm:$0xff]
    %v2066 = vld [vmem:[#allocation5 + $0x58] sm:$0xff]
    %v2067 = vld [vmem:[#allocation5 + $0x60] sm:$0xff]
    %v2068 = vld [vmem:[#allocation5 + $0x68] sm:$0xff]
    %v2069 = vld [vmem:[#allocation5 + $0x70] sm:$0xff]
    %v2070 = vld [vmem:[#allocation5 + $0x78] sm:$0xff]
    %v2071 = vld [vmem:[#allocation5 + $0x80] sm:$0xff]
    %v2072 = vld [vmem:[#allocation5 + $0x88] sm:$0xff]
    %v2073 = vld [vmem:[#allocation5 + $0x90] sm:$0xff]
    %v2074 = vld [vmem:[#allocation5 + $0x98] sm:$0xff]
    %v2075 = vld [vmem:[#allocation5 + $0xa0] sm:$0xff]
    %v2076 = vld [vmem:[#allocation5 + $0xa8] sm:$0xff]
    %v2077 = vld [vmem:[#allocation5 + $0xb0] sm:$0xff]
    %v2078 = vld [vmem:[#allocation5 + $0xb8] sm:$0xff]
    %v2079 = vld [vmem:[#allocation5 + $0xc0] sm:$0xff]
    %v2080 = vld [vmem:[#allocation5 + $0xc8] sm:$0xff]
    %v2081 = vld [vmem:[#allocation5 + $0xd0] sm:$0xff]
    %v2082 = vld [vmem:[#allocation5 + $0xd8] sm:$0xff]
    %v2083 = vld [vmem:[#allocation5 + $0xe0] sm:$0xff]
    %v2084 = vld [vmem:[#allocation5 + $0xe8] sm:$0xff]
    %v2085 = vld [vmem:[#allocation5 + $0xf0] sm:$0xff]
    %v2086 = vld [vmem:[#allocation5 + $0xf8] sm:$0xff]
    %v2087 = vld [vmem:[#allocation5 + $0x100] sm:$0xff]
    %v2088 = vld [vmem:[#allocation5 + $0x108] sm:$0xff]
    %v2089 = vld [vmem:[#allocation5 + $0x110] sm:$0xff]
    %v2090 = vld [vmem:[#allocation5 + $0x118] sm:$0xff]
    %v2091 = vld [vmem:[#allocation5 + $0x120] sm:$0xff]
    %v2092 = vld [vmem:[#allocation5 + $0x128] sm:$0xff]
    %v2093 = vld [vmem:[#allocation5 + $0x130] sm:$0xff]
    %v2094 = vld [vmem:[#allocation5 + $0x138] sm:$0xff]
    %v2095 = vld [vmem:[#allocation5 + $0x140] sm:$0xff]
    %v2096 = vld [vmem:[#allocation5 + $0x148] sm:$0xff]
    %v2097 = vld [vmem:[#allocation5 + $0x150] sm:$0xff]
    %v2098 = vld [vmem:[#allocation5 + $0x158] sm:$0xff]
    %v2099 = vld [vmem:[#allocation5 + $0x160] sm:$0xff]
    %v2100 = vld [vmem:[#allocation5 + $0x168] sm:$0xff]
    %v2101 = vld [vmem:[#allocation5 + $0x170] sm:$0xff]
    %v2102 = vld [vmem:[#allocation5 + $0x178] sm:$0xff]
    %v2103 = vld [vmem:[#allocation5 + $0x180] sm:$0xff]
    %v2104 = vld [vmem:[#allocation5 + $0x188] sm:$0xff]
    %v2105 = vld [vmem:[#allocation5 + $0x190] sm:$0xff]
    %v2106 = vld [vmem:[#allocation5 + $0x198] sm:$0xff]
    %v2107 = vld [vmem:[#allocation5 + $0x1a0] sm:$0xff]
    %v2108 = vld [vmem:[#allocation5 + $0x1a8] sm:$0xff]
    %v2109 = vld [vmem:[#allocation5 + $0x1b0] sm:$0xff]
    %v2110 = vld [vmem:[#allocation5 + $0x1b8] sm:$0xff]
    %v2111 = vld [vmem:[#allocation5 + $0x1c0] sm:$0xff]
    %v2112 = vld [vmem:[#allocation5 + $0x1c8] sm:$0xff]
    %v2113 = vld [vmem:[#allocation5 + $0x1d0] sm:$0xff]
    %v2114 = vld [vmem:[#allocation5 + $0x1d8] sm:$0xff]
    %v2115 = vld [vmem:[#allocation5 + $0x1e0] sm:$0xff]
    %v2116 = vld [vmem:[#allocation5 + $0x1e8] sm:$0xff]
    %v2117 = vld [vmem:[#allocation5 + $0x1f0] sm:$0xff]
    %v2118 = vld [vmem:[#allocation5 + $0x1f8] sm:$0xff]
    %v2119 = vld [vmem:[%s4] sm:$0x3]
    %v2121 = vperm.slane %v2119, 0
    %v2122 = vperm.slane %v2119, 1
    %v2189 = vunpack.c.l.b16 %v2055
    %v2190 = vunpack.c.h.b16 %v2055
    %v2191 = vunpack.c.l.b16 %v2056
    %v2192 = vunpack.c.h.b16 %v2056
    %v2193 = vunpack.c.l.b16 %v2057
    %v2194 = vunpack.c.h.b16 %v2057
    %v2195 = vunpack.c.l.b16 %v2058
    %v2196 = vunpack.c.h.b16 %v2058
    %v2197 = vunpack.c.l.b16 %v2059
    %v2198 = vunpack.c.h.b16 %v2059
    %v2199 = vunpack.c.l.b16 %v2060
    %v2200 = vunpack.c.h.b16 %v2060
    %v2201 = vunpack.c.l.b16 %v2061
    %v2202 = vunpack.c.h.b16 %v2061
    %v2203 = vunpack.c.l.b16 %v2062
    %v2204 = vunpack.c.h.b16 %v2062
    %v2205 = vunpack.c.l.b16 %v2063
    %v2206 = vunpack.c.h.b16 %v2063
    %v2207 = vunpack.c.l.b16 %v2064
    %v2208 = vunpack.c.h.b16 %v2064
    %v2209 = vunpack.c.l.b16 %v2065
    %v2210 = vunpack.c.h.b16 %v2065
    %v2211 = vunpack.c.l.b16 %v2066
    %v2212 = vunpack.c.h.b16 %v2066
    %v2213 = vunpack.c.l.b16 %v2067
    %v2214 = vunpack.c.h.b16 %v2067
    %v2215 = vunpack.c.l.b16 %v2068
    %v2216 = vunpack.c.h.b16 %v2068
    %v2217 = vunpack.c.l.b16 %v2069
    %v2218 = vunpack.c.h.b16 %v2069
    %v2219 = vunpack.c.l.b16 %v2070
    %v2220 = vunpack.c.h.b16 %v2070
    %v2221 = vunpack.c.l.b16 %v2071
    %v2222 = vunpack.c.h.b16 %v2071
    %v2223 = vunpack.c.l.b16 %v2072
    %v2224 = vunpack.c.h.b16 %v2072
    %v2225 = vunpack.c.l.b16 %v2073
    %v2226 = vunpack.c.h.b16 %v2073
    %v2227 = vunpack.c.l.b16 %v2074
    %v2228 = vunpack.c.h.b16 %v2074
    %v2229 = vunpack.c.l.b16 %v2075
    %v2230 = vunpack.c.h.b16 %v2075
    %v2231 = vunpack.c.l.b16 %v2076
    %v2232 = vunpack.c.h.b16 %v2076
    %v2233 = vunpack.c.l.b16 %v2077
    %v2234 = vunpack.c.h.b16 %v2077
    %v2235 = vunpack.c.l.b16 %v2078
    %v2236 = vunpack.c.h.b16 %v2078
    %v2237 = vunpack.c.l.b16 %v2079
    %v2238 = vunpack.c.h.b16 %v2079
    %v2239 = vunpack.c.l.b16 %v2080
    %v2240 = vunpack.c.h.b16 %v2080
    %v2241 = vunpack.c.l.b16 %v2081
    %v2242 = vunpack.c.h.b16 %v2081
    %v2243 = vunpack.c.l.b16 %v2082
    %v2244 = vunpack.c.h.b16 %v2082
    %v2245 = vunpack.c.l.b16 %v2083
    %v2246 = vunpack.c.h.b16 %v2083
    %v2247 = vunpack.c.l.b16 %v2084
    %v2248 = vunpack.c.h.b16 %v2084
    %v2249 = vunpack.c.l.b16 %v2085
    %v2250 = vunpack.c.h.b16 %v2085
    %v2251 = vunpack.c.l.b16 %v2086
    %v2252 = vunpack.c.h.b16 %v2086
    %v2253 = vunpack.c.l.b16 %v2087
    %v2254 = vunpack.c.h.b16 %v2087
    %v2255 = vunpack.c.l.b16 %v2088
    %v2256 = vunpack.c.h.b16 %v2088
    %v2257 = vunpack.c.l.b16 %v2089
    %v2258 = vunpack.c.h.b16 %v2089
    %v2259 = vunpack.c.l.b16 %v2090
    %v2260 = vunpack.c.h.b16 %v2090
    %v2261 = vunpack.c.l.b16 %v2091
    %v2262 = vunpack.c.h.b16 %v2091
    %v2263 = vunpack.c.l.b16 %v2092
    %v2264 = vunpack.c.h.b16 %v2092
    %v2265 = vunpack.c.l.b16 %v2093
    %v2266 = vunpack.c.h.b16 %v2093
    %v2267 = vunpack.c.l.b16 %v2094
    %v2268 = vunpack.c.h.b16 %v2094
    %v2269 = vunpack.c.l.b16 %v2095
    %v2270 = vunpack.c.h.b16 %v2095
    %v2271 = vunpack.c.l.b16 %v2096
    %v2272 = vunpack.c.h.b16 %v2096
    %v2273 = vunpack.c.l.b16 %v2097
    %v2274 = vunpack.c.h.b16 %v2097
    %v2275 = vunpack.c.l.b16 %v2098
    %v2276 = vunpack.c.h.b16 %v2098
    %v2277 = vunpack.c.l.b16 %v2099
    %v2278 = vunpack.c.h.b16 %v2099
    %v2279 = vunpack.c.l.b16 %v2100
    %v2280 = vunpack.c.h.b16 %v2100
    %v2281 = vunpack.c.l.b16 %v2101
    %v2282 = vunpack.c.h.b16 %v2101
    %v2283 = vunpack.c.l.b16 %v2102
    %v2284 = vunpack.c.h.b16 %v2102
    %v2285 = vunpack.c.l.b16 %v2103
    %v2286 = vunpack.c.h.b16 %v2103
    %v2287 = vunpack.c.l.b16 %v2104
    %v2288 = vunpack.c.h.b16 %v2104
    %v2289 = vunpack.c.l.b16 %v2105
    %v2290 = vunpack.c.h.b16 %v2105
    %v2291 = vunpack.c.l.b16 %v2106
    %v2292 = vunpack.c.h.b16 %v2106
    %v2293 = vunpack.c.l.b16 %v2107
    %v2294 = vunpack.c.h.b16 %v2107
    %v2295 = vunpack.c.l.b16 %v2108
    %v2296 = vunpack.c.h.b16 %v2108
    %v2297 = vunpack.c.l.b16 %v2109
    %v2298 = vunpack.c.h.b16 %v2109
    %v2299 = vunpack.c.l.b16 %v2110
    %v2300 = vunpack.c.h.b16 %v2110
    %v2301 = vunpack.c.l.b16 %v2111
    %v2302 = vunpack.c.h.b16 %v2111
    %v2303 = vunpack.c.l.b16 %v2112
    %v2304 = vunpack.c.h.b16 %v2112
    %v2305 = vunpack.c.l.b16 %v2113
    %v2306 = vunpack.c.h.b16 %v2113
    %v2307 = vunpack.c.l.b16 %v2114
    %v2308 = vunpack.c.h.b16 %v2114
    %v2309 = vunpack.c.l.b16 %v2115
    %v2310 = vunpack.c.h.b16 %v2115
    %v2311 = vunpack.c.l.b16 %v2116
    %v2312 = vunpack.c.h.b16 %v2116
    %v2313 = vunpack.c.l.b16 %v2117
    %v2314 = vunpack.c.h.b16 %v2117
    %v2315 = vunpack.c.l.b16 %v2118
    %v2316 = vunpack.c.h.b16 %v2118
    %v2317 = vpack.c.b16 %v2191, %v2189
    %v2318 = vpack.c.b16 %v2192, %v2190
    %v2319 = vpack.c.b16 %v2195, %v2193
    %v2320 = vpack.c.b16 %v2196, %v2194
    %v2321 = vpack.c.b16 %v2199, %v2197
    %v2322 = vpack.c.b16 %v2200, %v2198
    %v2323 = vpack.c.b16 %v2203, %v2201
    %v2324 = vpack.c.b16 %v2204, %v2202
    %v2325 = vpack.c.b16 %v2207, %v2205
    %v2326 = vpack.c.b16 %v2208, %v2206
    %v2327 = vpack.c.b16 %v2211, %v2209
    %v2328 = vpack.c.b16 %v2212, %v2210
    %v2329 = vpack.c.b16 %v2215, %v2213
    %v2330 = vpack.c.b16 %v2216, %v2214
    %v2331 = vpack.c.b16 %v2219, %v2217
    %v2332 = vpack.c.b16 %v2220, %v2218
    %v2333 = vpack.c.b16 %v2223, %v2221
    %v2334 = vpack.c.b16 %v2224, %v2222
    %v2335 = vpack.c.b16 %v2227, %v2225
    %v2336 = vpack.c.b16 %v2228, %v2226
    %v2337 = vpack.c.b16 %v2231, %v2229
    %v2338 = vpack.c.b16 %v2232, %v2230
    %v2339 = vpack.c.b16 %v2235, %v2233
    %v2340 = vpack.c.b16 %v2236, %v2234
    %v2341 = vpack.c.b16 %v2239, %v2237
    %v2342 = vpack.c.b16 %v2240, %v2238
    %v2343 = vpack.c.b16 %v2243, %v2241
    %v2344 = vpack.c.b16 %v2244, %v2242
    %v2345 = vpack.c.b16 %v2247, %v2245
    %v2346 = vpack.c.b16 %v2248, %v2246
    %v2347 = vpack.c.b16 %v2251, %v2249
    %v2348 = vpack.c.b16 %v2252, %v2250
    %v2349 = vpack.c.b16 %v2255, %v2253
    %v2350 = vpack.c.b16 %v2256, %v2254
    %v2351 = vpack.c.b16 %v2259, %v2257
    %v2352 = vpack.c.b16 %v2260, %v2258
    %v2353 = vpack.c.b16 %v2263, %v2261
    %v2354 = vpack.c.b16 %v2264, %v2262
    %v2355 = vpack.c.b16 %v2267, %v2265
    %v2356 = vpack.c.b16 %v2268, %v2266
    %v2357 = vpack.c.b16 %v2271, %v2269
    %v2358 = vpack.c.b16 %v2272, %v2270
    %v2359 = vpack.c.b16 %v2275, %v2273
    %v2360 = vpack.c.b16 %v2276, %v2274
    %v2361 = vpack.c.b16 %v2279, %v2277
    %v2362 = vpack.c.b16 %v2280, %v2278
    %v2363 = vpack.c.b16 %v2283, %v2281
    %v2364 = vpack.c.b16 %v2284, %v2282
    %v2365 = vpack.c.b16 %v2287, %v2285
    %v2366 = vpack.c.b16 %v2288, %v2286
    %v2367 = vpack.c.b16 %v2291, %v2289
    %v2368 = vpack.c.b16 %v2292, %v2290
    %v2369 = vpack.c.b16 %v2295, %v2293
    %v2370 = vpack.c.b16 %v2296, %v2294
    %v2371 = vpack.c.b16 %v2299, %v2297
    %v2372 = vpack.c.b16 %v2300, %v2298
    %v2373 = vpack.c.b16 %v2303, %v2301
    %v2374 = vpack.c.b16 %v2304, %v2302
    %v2375 = vpack.c.b16 %v2307, %v2305
    %v2376 = vpack.c.b16 %v2308, %v2306
    %v2377 = vpack.c.b16 %v2311, %v2309
    %v2378 = vpack.c.b16 %v2312, %v2310
    %v2379 = vpack.c.b16 %v2315, %v2313
    %v2380 = vpack.c.b16 %v2316, %v2314
    %2445 = vmatpush.bf16.msra.mxu0 %v2331
    %2446 = vmatpush.bf16.msra.mxu0 %v2329
    %2447 = vmatpush.bf16.msra.mxu0 %v2327
    %2448 = vmatpush.bf16.msra.mxu0 %v2325
    %2449 = vmatpush.bf16.msra.mxu0 %v2323
    %2450 = vmatpush.bf16.msra.mxu0 %v2321
    %2451 = vmatpush.bf16.msra.mxu0 %v2319
    %2452 = vmatpush.bf16.msra.mxu0 %v2317
    %2453 = vmatmul.bf16.gmra.mxu0 %v2051
    %v2454 = vpop.f32.mrf.mxu0
    %v2455 = vadd.f32 %v2121, %v2454
    %v2456 = vpop.f32.mrf.mxu0
    %2457 = vdwg.mxu0
    %2458 = vmatpush.bf16.msra.mxu0 %v2347
    %2459 = vmatpush.bf16.msra.mxu0 %v2345
    %2460 = vmatpush.bf16.msra.mxu0 %v2343
    %2461 = vmatpush.bf16.msra.mxu0 %v2341
    %2462 = vmatpush.bf16.msra.mxu0 %v2339
    %2463 = vmatpush.bf16.msra.mxu0 %v2337
    %2464 = vmatpush.bf16.msra.mxu0 %v2335
    %2465 = vmatpush.bf16.msra.mxu0 %v2333
    %2466 = vmatmul.bf16.gmra.mxu0 %v2052
    %v2467 = vpop.f32.mrf.mxu0
    %v2468 = vadd.f32 %v2455, %v2467
    %v2469 = vpop.f32.mrf.mxu0
    %2470 = vdwg.mxu0
    %2471 = vmatpush.bf16.msra.mxu0 %v2363
    %2472 = vmatpush.bf16.msra.mxu0 %v2361
    %2473 = vmatpush.bf16.msra.mxu0 %v2359
    %2474 = vmatpush.bf16.msra.mxu0 %v2357
    %2475 = vmatpush.bf16.msra.mxu0 %v2355
    %2476 = vmatpush.bf16.msra.mxu0 %v2353
    %2477 = vmatpush.bf16.msra.mxu0 %v2351
    %2478 = vmatpush.bf16.msra.mxu0 %v2349
    %2479 = vmatmul.bf16.gmra.mxu0 %v2053
    %v2480 = vpop.f32.mrf.mxu0
    %v2481 = vadd.f32 %v2468, %v2480
    %v2482 = vpop.f32.mrf.mxu0
    %2483 = vdwg.mxu0
    %2484 = vmatpush.bf16.msra.mxu0 %v2379
    %2485 = vmatpush.bf16.msra.mxu0 %v2377
    %2486 = vmatpush.bf16.msra.mxu0 %v2375
    %2487 = vmatpush.bf16.msra.mxu0 %v2373
    %2488 = vmatpush.bf16.msra.mxu0 %v2371
    %2489 = vmatpush.bf16.msra.mxu0 %v2369
    %2490 = vmatpush.bf16.msra.mxu0 %v2367
    %2491 = vmatpush.bf16.msra.mxu0 %v2365
    %2492 = vmatmul.bf16.gmra.mxu0 %v2054
    %v2493 = vpop.f32.mrf.mxu0
    %v2494 = vadd.f32 %v2481, %v2493
    %v2495 = vpop.f32.mrf.mxu0
    %2496 = vdwg.mxu0
    %2497 = vmatpush.bf16.msra.mxu0 %v2332
    %2498 = vmatpush.bf16.msra.mxu0 %v2330
    %2499 = vmatpush.bf16.msra.mxu0 %v2328
    %2500 = vmatpush.bf16.msra.mxu0 %v2326
    %2501 = vmatpush.bf16.msra.mxu0 %v2324
    %2502 = vmatpush.bf16.msra.mxu0 %v2322
    %2503 = vmatpush.bf16.msra.mxu0 %v2320
    %2504 = vmatpush.bf16.msra.mxu0 %v2318
    %2505 = vmatmul.bf16.gmra.mxu0 %v2051
    %v2506 = vpop.f32.mrf.mxu0
    %v2507 = vadd.f32 %v2122, %v2506
    %v2508 = vpop.f32.mrf.mxu0
    %2509 = vdwg.mxu0
    %2510 = vmatpush.bf16.msra.mxu0 %v2348
    %2511 = vmatpush.bf16.msra.mxu0 %v2346
    %2512 = vmatpush.bf16.msra.mxu0 %v2344
    %2513 = vmatpush.bf16.msra.mxu0 %v2342
    %2514 = vmatpush.bf16.msra.mxu0 %v2340
    %2515 = vmatpush.bf16.msra.mxu0 %v2338
    %2516 = vmatpush.bf16.msra.mxu0 %v2336
    %2517 = vmatpush.bf16.msra.mxu0 %v2334
    %2518 = vmatmul.bf16.gmra.mxu0 %v2052
    %v2519 = vpop.f32.mrf.mxu0
    %v2520 = vadd.f32 %v2507, %v2519
    %v2521 = vpop.f32.mrf.mxu0
    %2522 = vdwg.mxu0
    %2523 = vmatpush.bf16.msra.mxu0 %v2364
    %2524 = vmatpush.bf16.msra.mxu0 %v2362
    %2525 = vmatpush.bf16.msra.mxu0 %v2360
    %2526 = vmatpush.bf16.msra.mxu0 %v2358
    %2527 = vmatpush.bf16.msra.mxu0 %v2356
    %2528 = vmatpush.bf16.msra.mxu0 %v2354
    %2529 = vmatpush.bf16.msra.mxu0 %v2352
    %2530 = vmatpush.bf16.msra.mxu0 %v2350
    %2531 = vmatmul.bf16.gmra.mxu0 %v2053
    %v2532 = vpop.f32.mrf.mxu0
    %v2533 = vadd.f32 %v2520, %v2532
    %v2534 = vpop.f32.mrf.mxu0
    %2535 = vdwg.mxu0
    %2536 = vmatpush.bf16.msra.mxu0 %v2380
    %2537 = vmatpush.bf16.msra.mxu0 %v2378
    %2538 = vmatpush.bf16.msra.mxu0 %v2376
    %2539 = vmatpush.bf16.msra.mxu0 %v2374
    %2540 = vmatpush.bf16.msra.mxu0 %v2372
    %2541 = vmatpush.bf16.msra.mxu0 %v2370
    %2542 = vmatpush.bf16.msra.mxu0 %v2368
    %2543 = vmatpush.bf16.msra.mxu0 %v2366
    %2544 = vmatmul.bf16.gmra.mxu0 %v2054
    %v2545 = vpop.f32.mrf.mxu0
    %v2546 = vadd.f32 %v2533, %v2545
    %v2547 = vpop.f32.mrf.mxu0
    %2548 = vdwg.mxu0
    %v2549 = vmax.f32 %v2494, 0.0
    %v2550 = vmax.f32 %v2546, 0.0
    %v2551 = vpack.c.bf16 %v2549, %v2549
    %v2552 = vpack.c.bf16 %v2550, %v2550
    %v2553 = vld [vmem:[%s5] sm:$0xf]
    %v2554 = vld [vmem:[%s5 + $0x4] sm:$0xf]
    %v2555 = vld [vmem:[%s5 + $0x8] sm:$0xf]
    %v2556 = vld [vmem:[%s5 + $0xc] sm:$0xf]
    %v2557 = vld [vmem:[%s5 + $0x10] sm:$0xf]
    %v2558 = vld [vmem:[%s5 + $0x14] sm:$0xf]
    %v2559 = vld [vmem:[%s5 + $0x18] sm:$0xf]
    %v2560 = vld [vmem:[%s5 + $0x1c] sm:$0xf]
    %v2561 = vld [vmem:[%s5 + $0x20] sm:$0xf]
    %v2562 = vld [vmem:[%s5 + $0x24] sm:$0xf]
    %v2563 = vld [vmem:[%s5 + $0x28] sm:$0xf]
    %v2564 = vld [vmem:[%s5 + $0x2c] sm:$0xf]
    %v2565 = vld [vmem:[%s5 + $0x30] sm:$0xf]
    %v2566 = vld [vmem:[%s5 + $0x34] sm:$0xf]
    %v2567 = vld [vmem:[%s5 + $0x38] sm:$0xf]
    %v2568 = vld [vmem:[%s5 + $0x3c] sm:$0xf]
    %v2569 = vld [vmem:[%s5 + $0x40] sm:$0xf]
    %v2570 = vld [vmem:[%s5 + $0x44] sm:$0xf]
    %v2571 = vld [vmem:[%s5 + $0x48] sm:$0xf]
    %v2572 = vld [vmem:[%s5 + $0x4c] sm:$0xf]
    %v2573 = vld [vmem:[%s5 + $0x50] sm:$0xf]
    %v2574 = vld [vmem:[%s5 + $0x54] sm:$0xf]
    %v2575 = vld [vmem:[%s5 + $0x58] sm:$0xf]
    %v2576 = vld [vmem:[%s5 + $0x5c] sm:$0xf]
    %v2577 = vld [vmem:[%s5 + $0x60] sm:$0xf]
    %v2578 = vld [vmem:[%s5 + $0x64] sm:$0xf]
    %v2579 = vld [vmem:[%s5 + $0x68] sm:$0xf]
    %v2580 = vld [vmem:[%s5 + $0x6c] sm:$0xf]
    %v2581 = vld [vmem:[%s5 + $0x70] sm:$0xf]
    %v2582 = vld [vmem:[%s5 + $0x74] sm:$0xf]
    %v2583 = vld [vmem:[%s5 + $0x78] sm:$0xf]
    %v2584 = vld [vmem:[%s5 + $0x7c] sm:$0xf]
    %v2585 = vld [vmem:[%s6] sm:$0x1]
    %v2587 = vperm.slane %v2585, 0
    %v2621 = vunpack.c.l.b16 %v2553
    %v2622 = vunpack.c.l.b16 %v2554
    %v2623 = vunpack.c.l.b16 %v2555
    %v2624 = vunpack.c.l.b16 %v2556
    %v2625 = vunpack.c.l.b16 %v2557
    %v2626 = vunpack.c.l.b16 %v2558
    %v2627 = vunpack.c.l.b16 %v2559
    %v2628 = vunpack.c.l.b16 %v2560
    %v2629 = vunpack.c.l.b16 %v2561
    %v2630 = vunpack.c.l.b16 %v2562
    %v2631 = vunpack.c.l.b16 %v2563
    %v2632 = vunpack.c.l.b16 %v2564
    %v2633 = vunpack.c.l.b16 %v2565
    %v2634 = vunpack.c.l.b16 %v2566
    %v2635 = vunpack.c.l.b16 %v2567
    %v2636 = vunpack.c.l.b16 %v2568
    %v2637 = vunpack.c.l.b16 %v2569
    %v2638 = vunpack.c.l.b16 %v2570
    %v2639 = vunpack.c.l.b16 %v2571
    %v2640 = vunpack.c.l.b16 %v2572
    %v2641 = vunpack.c.l.b16 %v2573
    %v2642 = vunpack.c.l.b16 %v2574
    %v2643 = vunpack.c.l.b16 %v2575
    %v2644 = vunpack.c.l.b16 %v2576
    %v2645 = vunpack.c.l.b16 %v2577
    %v2646 = vunpack.c.l.b16 %v2578
    %v2647 = vunpack.c.l.b16 %v2579
    %v2648 = vunpack.c.l.b16 %v2580
    %v2649 = vunpack.c.l.b16 %v2581
    %v2650 = vunpack.c.l.b16 %v2582
    %v2651 = vunpack.c.l.b16 %v2583
    %v2652 = vunpack.c.l.b16 %v2584
    %v2653 = vpack.c.b16 %v2622, %v2621
    %v2654 = vpack.c.b16 %v2624, %v2623
    %v2655 = vpack.c.b16 %v2626, %v2625
    %v2656 = vpack.c.b16 %v2628, %v2627
    %v2657 = vpack.c.b16 %v2630, %v2629
    %v2658 = vpack.c.b16 %v2632, %v2631
    %v2659 = vpack.c.b16 %v2634, %v2633
    %v2660 = vpack.c.b16 %v2636, %v2635
    %v2661 = vpack.c.b16 %v2638, %v2637
    %v2662 = vpack.c.b16 %v2640, %v2639
    %v2663 = vpack.c.b16 %v2642, %v2641
    %v2664 = vpack.c.b16 %v2644, %v2643
    %v2665 = vpack.c.b16 %v2646, %v2645
    %v2666 = vpack.c.b16 %v2648, %v2647
    %v2667 = vpack.c.b16 %v2650, %v2649
    %v2668 = vpack.c.b16 %v2652, %v2651
    %2685 = vmatpush.bf16.msra.mxu0 %v2660
    %2686 = vmatpush.bf16.msra.mxu0 %v2659
    %2687 = vmatpush.bf16.msra.mxu0 %v2658
    %2688 = vmatpush.bf16.msra.mxu0 %v2657
    %2689 = vmatpush.bf16.msra.mxu0 %v2656
    %2690 = vmatpush.bf16.msra.mxu0 %v2655
    %2691 = vmatpush.bf16.msra.mxu0 %v2654
    %2692 = vmatpush.bf16.msra.mxu0 %v2653
    %2693 = vmatmul.bf16.gmra.mxu0 %v2551
    %v2694 = vpop.f32.mrf.mxu0
    %v2695 = vadd.f32 %v2587, %v2694
    %v2696 = vpop.f32.mrf.mxu0
    %2697 = vdwg.mxu0
    %2698 = vmatpush.bf16.msra.mxu0 %v2668
    %2699 = vmatpush.bf16.msra.mxu0 %v2667
    %2700 = vmatpush.bf16.msra.mxu0 %v2666
    %2701 = vmatpush.bf16.msra.mxu0 %v2665
    %2702 = vmatpush.bf16.msra.mxu0 %v2664
    %2703 = vmatpush.bf16.msra.mxu0 %v2663
    %2704 = vmatpush.bf16.msra.mxu0 %v2662
    %2705 = vmatpush.bf16.msra.mxu0 %v2661
    %2706 = vmatmul.bf16.gmra.mxu0 %v2552
    %v2707 = vpop.f32.mrf.mxu0
    %v2708 = vadd.f32 %v2695, %v2707
    %v2709 = vpop.f32.mrf.mxu0
    %2710 = vdwg.mxu0
    %v2711 = vmax.f32 %v2708, 0.0
    %v2712 = vpack.c.bf16 %v2711, %v2711
    %v2713 = vld [vmem:[%s7] sm:$0xf]
    %v2714 = vld [vmem:[%s7 + $0x4] sm:$0xf]
    %v2715 = vld [vmem:[%s7 + $0x8] sm:$0xf]
    %v2716 = vld [vmem:[%s7 + $0xc] sm:$0xf]
    %v2717 = vld [vmem:[%s8] sm:$0x1]
    %v2719 = vperm.slane %v2717, 0
    %v2725 = vunpack.c.l.b16 %v2713
    %v2726 = vunpack.c.l.b16 %v2714
    %v2727 = vunpack.c.l.b16 %v2715
    %v2728 = vunpack.c.l.b16 %v2716
    %v2729 = vpack.c.b16 %v2726, %v2725
    %v2730 = vpack.c.b16 %v2728, %v2727
    %vm2733 = vcmask 261120
    %v2735 = vsel %vm2733, %v2712, 0
    %2737 = vmatpush.bf16.msra.mxu0 0
    %2738 = vmatpush.bf16.msra.mxu0 0
    %2739 = vmatpush.bf16.msra.mxu0 0
    %2740 = vmatpush.bf16.msra.mxu0 0
    %2741 = vmatpush.bf16.msra.mxu0 0
    %2742 = vmatpush.bf16.msra.mxu0 0
    %2743 = vmatpush.bf16.msra.mxu0 %v2730
    %2744 = vmatpush.bf16.msra.mxu0 %v2729
    %2745 = vmatmul.bf16.gmra.mxu0 %v2735
    %v2746 = vpop.f32.mrf.mxu0
    %v2747 = vadd.f32 %v2719, %v2746
    %v2748 = vpop.f32.mrf.mxu0
    %2749 = vdwg.mxu0
    %2750 = vst [vmem:[#allocation7] sm:$0x3] %v2747
    // Predicated region
    $region46: #{sequential_vae_forward.1} parent=1 // pred_check
      _
    $region47: #{sequential_vae_forward.1} parent=1 // pred_check_branch
      %2752 = sbr.rel (0) target = $region49
    $region48: #{sequential_vae_forward.1} parent=1 // pred_region
      %2754 = vsyncadd [#allocation4], 0
      %s2756 = sshll.u32 [#allocation7], 4
      %s2757 = int_to_ptr.vmem [resolvable:$true] %s2756
      %s2758 = sshll.u32 %s9, 4
      %s2759 = int_to_ptr.hbm [resolvable:$true] %s2758
      %2761 = dma.vmem_to_hbm [thread:$0]  %s2757, 32, %s2759, [#allocation4]
    $region49: #{sequential_vae_forward.1} parent=1 // pred_fallthru
      _
    // Predicated region
    $region50: #{sequential_vae_forward.1} parent=1 // pred_check
      _
    $region51: #{sequential_vae_forward.1} parent=1 // pred_check_branch
      %2763 = sbr.rel (0) target = $region53
    $region52: #{sequential_vae_forward.1} parent=1 // pred_region
      %2765 = dma.done [#allocation4], 32
    $region53: #{sequential_vae_forward.1} parent=1 // pred_fallthru
      _
    %2766 = vsyncpa [#allocation3], 1
    %2767 = vsyncpa [#allocation6], 1
    %2768 = vsyncpa [#allocation4], 1

</llo_original>
